<compile_context>
chip_gen: v7x
topology: tpu7x:2x2x1
jax: 0.10.0
libtpu: 0.0.40
codegen_flags: <defaults>
</compile_context>

<pallas_src>
import numpy as np
import jax
import jax.numpy as jnp
from jax.experimental import pallas as pl
from jax.experimental.pallas import tpu as pltpu

POOL_KERNELS = (2, 4, 6, 12)


def _bilinear_matrix(out_size, in_size):
    """Row-interpolation matrix for bilinear upsampling, align_corners=False."""
    i = np.arange(out_size, dtype=np.float64)
    scale = in_size / out_size
    src = (i + 0.5) * scale - 0.5
    src = np.maximum(src, 0.0)                       # PyTorch clamps negative coords
    lo = np.minimum(np.floor(src).astype(np.int64), in_size - 1)
    hi = np.minimum(lo + 1, in_size - 1)
    frac = src - lo
    w = np.zeros((out_size, in_size), dtype=np.float32)
    w[np.arange(out_size), lo] += (1.0 - frac)
    w[np.arange(out_size), hi] += frac
    return w


def _spp_fused_kernel(x_ref, p1_ref, p2_ref, p3_ref, p4_ref,
                      w_ref, b_ref,
                      wr1_ref, wc1_ref, wr2_ref, wc2_ref,
                      wr3_ref, wc3_ref, wr4_ref, wc4_ref,
                      o_ref, y_scr):
    # x_ref  : (1, C, H, W)     input slab for this batch element
    # pK_ref : (1, C, Pk)       max-pooled features, spatially flattened
    # w_ref  : (4, C_out, C)    stacked 1x1 conv weights
    # b_ref  : (4, C_out, 1)    stacked 1x1 conv biases
    # wrK    : (H, hk)          bilinear row-interp matrix (align_corners=False)
    # wcK    : (wk, W)          transposed bilinear column-interp matrix
    # o_ref  : (1, 4*C_out + C, H, W)  slab of the concatenated output
    # y_scr  : (H//2, W//2) f32 scratch, used to unflatten conv outputs
    c_out = w_ref.shape[1]
    c_in = x_ref.shape[1]
    pooled_refs = (p1_ref, p2_ref, p3_ref, p4_ref)
    wr_refs = (wr1_ref, wr2_ref, wr3_ref, wr4_ref)
    wc_refs = (wc1_ref, wc2_ref, wc3_ref, wc4_ref)

    for bi in range(4):
        pooled = pooled_refs[bi][0]                          # (C, Pk)
        wr = wr_refs[bi][...]                                # (H, hk)
        wct = wc_refs[bi][...]                               # (wk, W)
        hk = wr.shape[1]
        wk = wct.shape[0]

        # 1x1 conv over all pooled positions of this branch (one matmul).
        y = jnp.dot(w_ref[bi], pooled,
                    preferred_element_type=jnp.float32) + b_ref[bi]   # (C_out, Pk)

        for co in range(c_out):
            # Unflatten y[co] -> (hk, wk) with cheap row copies into scratch.
            for i in range(hk):
                y_scr[i:i + 1, 0:wk] = y[co:co + 1, i * wk:(i + 1) * wk]
            y2d = y_scr[0:hk, 0:wk]                                       # (hk, wk)
            # Separable bilinear upsample: Wr @ y2d @ Wc^T (two small matmuls).
            t = jnp.dot(wr, y2d, preferred_element_type=jnp.float32)      # (H, wk)
            up = jnp.dot(t, wct, preferred_element_type=jnp.float32)      # (H, W)
            o_ref[0, bi * c_out + co, :, :] = up.astype(o_ref.dtype)

    # torch.cat([l1, l2, l3, l4, x], dim=1): copy x into the trailing channels.
    o_ref[0, 4 * c_out:4 * c_out + c_in, :, :] = x_ref[0].astype(o_ref.dtype)


def spp_block(x, params):
    N, C, H, W = x.shape
    C_out = params[0][0].shape[0]
    out_ch = 4 * C_out + C

    # --- plain-JAX glue: hierarchical floor-mode max pooling (reads x once) ---
    def _pool(a, k):
        n, c, h, w = a.shape
        hk, wk = h // k, w // k
        a = a[:, :, : hk * k, : wk * k].reshape(n, c, hk, k, wk, k)
        return a.max(axis=(3, 5))

    p2 = _pool(x, 2)        # == MaxPool2d(2)(x)
    p4 = _pool(p2, 2)       # == MaxPool2d(4)(x)   (floor identity)
    p6 = _pool(p2, 3)       # == MaxPool2d(6)(x)
    p12 = _pool(p6, 2)      # == MaxPool2d(12)(x)
    pooled_flat = [p.reshape(N, C, -1) for p in (p2, p4, p6, p12)]

    # Stacked 1x1-conv parameters.
    w_stack = jnp.stack([w for (w, _) in params])                # (4, C_out, C)
    b_stack = jnp.stack([b for (_, b) in params])[..., None]     # (4, C_out, 1)

    # Separable bilinear (align_corners=False) interpolation matrices.
    interp = []
    for k in POOL_KERNELS:
        hk, wk = H // k, W // k
        interp.append(jnp.asarray(_bilinear_matrix(H, hk)))      # (H, hk)
        interp.append(jnp.asarray(_bilinear_matrix(W, wk).T))    # (wk, W)

    in_specs = [pl.BlockSpec((1, C, H, W), lambda n: (n, 0, 0, 0))]
    for p in pooled_flat:
        in_specs.append(pl.BlockSpec((1, C, p.shape[-1]), lambda n: (n, 0, 0)))
    in_specs.append(pl.BlockSpec((4, C_out, C), lambda n: (0, 0, 0)))
    in_specs.append(pl.BlockSpec((4, C_out, 1), lambda n: (0, 0, 0)))
    for m in interp:
        in_specs.append(pl.BlockSpec(m.shape, lambda n: (0, 0)))

    out = pl.pallas_call(
        _spp_fused_kernel,
        out_shape=jax.ShapeDtypeStruct((N, out_ch, H, W), jnp.float32),
        grid_spec=pltpu.PrefetchScalarGridSpec(
            num_scalar_prefetch=0,
            grid=(N,),
            in_specs=in_specs,
            out_specs=pl.BlockSpec((1, out_ch, H, W), lambda n: (n, 0, 0, 0)),
            scratch_shapes=[pltpu.VMEM((H // 2, W // 2), jnp.float32)],
        ),
        compiler_params=pltpu.CompilerParams(
            dimension_semantics=("parallel",)),
    )(x, *pooled_flat, w_stack, b_stack, *interp)
    return out


def spp_block_ref(x, params):
    """Pure-JAX reference implementing the identical math (for verification)."""
    N, C, H, W = x.shape
    layers = []
    for k, (w, b) in zip(POOL_KERNELS, params):
        hk, wk = H // k, W // k
        xc = x[:, :, : hk * k, : wk * k]
        pooled = xc.reshape(N, C, hk, k, wk, k).max(axis=(3, 5))     # (N,C,hk,wk)
        y = jnp.einsum('oc,nchw->nohw', w, pooled) + b[None, :, None, None]
        wr = jnp.asarray(_bilinear_matrix(H, hk))
        wc = jnp.asarray(_bilinear_matrix(W, wk))
        up = jnp.einsum('Hh,nohw,Ww->noHW', wr, y, wc)
        layers.append(up)
    return jnp.concatenate(layers + [x], axis=1)


if __name__ == "__main__":
    N, C, H, W = 2, 4, 24, 24                      # in_channels=4 -> C//4 = 1 per branch
    key = jax.random.PRNGKey(0)
    kx, *kp = jax.random.split(key, 9)
    x = jax.random.normal(kx, (N, C, H, W), dtype=jnp.float32)

    params = []
    for i in range(4):                             # conv1..conv4: 1x1, C -> C//4
        kw, kb = kp[2 * i], kp[2 * i + 1]
        wgt = 0.1 * jax.random.normal(kw, (C // 4, C), dtype=jnp.float32)
        bia = 0.1 * jax.random.normal(kb, (C // 4,), dtype=jnp.float32)
        params.append((wgt, bia))

    out = jax.jit(spp_block)(x, params)
    jax.block_until_ready(out)
    assert out.shape == (N, 2 * C, H, W), out.shape

    ref = spp_block_ref(x, params)
    assert jnp.allclose(out, ref, atol=1e-4, rtol=1e-4)
    print("KERNEL_OK")
</pallas_src>

<mosaic_0001>
module attributes {stable_mosaic.version = 11 : i64} {
  func.func @_spp_fused_kernel(%arg0: i32, %arg1: memref<1x4x24x24xf32, #tpu.memory_space<vmem>>, %arg2: memref<1x4x144xf32, #tpu.memory_space<vmem>>, %arg3: memref<1x4x36xf32, #tpu.memory_space<vmem>>, %arg4: memref<1x4x16xf32, #tpu.memory_space<vmem>>, %arg5: memref<1x4x4xf32, #tpu.memory_space<vmem>>, %arg6: memref<4x1x4xf32, #tpu.memory_space<vmem>>, %arg7: memref<4x1x1xf32, #tpu.memory_space<vmem>>, %arg8: memref<24x12xf32, #tpu.memory_space<vmem>>, %arg9: memref<12x24xf32, #tpu.memory_space<vmem>>, %arg10: memref<24x6xf32, #tpu.memory_space<vmem>>, %arg11: memref<6x24xf32, #tpu.memory_space<vmem>>, %arg12: memref<24x4xf32, #tpu.memory_space<vmem>>, %arg13: memref<4x24xf32, #tpu.memory_space<vmem>>, %arg14: memref<24x2xf32, #tpu.memory_space<vmem>>, %arg15: memref<2x24xf32, #tpu.memory_space<vmem>>, %arg16: memref<1x8x24x24xf32, #tpu.memory_space<vmem>>, %arg17: memref<12x12xf32, #tpu.memory_space<vmem>>) attributes {dimension_semantics = [#tpu.dimension_semantics<parallel>], iteration_bounds = array<i64: 2>, scalar_prefetch = 0 : i64, scratch_operands = 1 : i64, tpu.core_type = #tpu.core_type<tc>, window_params = [{transform_indices = @transform_0, window_bounds = array<i64: 1, 4, 24, 24>}, {transform_indices = @transform_1, window_bounds = array<i64: 1, 4, 144>}, {transform_indices = @transform_2, window_bounds = array<i64: 1, 4, 36>}, {transform_indices = @transform_3, window_bounds = array<i64: 1, 4, 16>}, {transform_indices = @transform_4, window_bounds = array<i64: 1, 4, 4>}, {pipeline_mode = #tpu.pipeline_mode<synchronous>, transform_indices = @transform_5, window_bounds = array<i64: 4, 1, 4>}, {pipeline_mode = #tpu.pipeline_mode<synchronous>, transform_indices = @transform_6, window_bounds = array<i64: 4, 1, 1>}, {pipeline_mode = #tpu.pipeline_mode<synchronous>, transform_indices = @transform_7, window_bounds = array<i64: 24, 12>}, {pipeline_mode = #tpu.pipeline_mode<synchronous>, transform_indices = @transform_8, window_bounds = array<i64: 12, 24>}, {pipeline_mode = #tpu.pipeline_mode<synchronous>, transform_indices = @transform_9, window_bounds = array<i64: 24, 6>}, {pipeline_mode = #tpu.pipeline_mode<synchronous>, transform_indices = @transform_10, window_bounds = array<i64: 6, 24>}, {pipeline_mode = #tpu.pipeline_mode<synchronous>, transform_indices = @transform_11, window_bounds = array<i64: 24, 4>}, {pipeline_mode = #tpu.pipeline_mode<synchronous>, transform_indices = @transform_12, window_bounds = array<i64: 4, 24>}, {pipeline_mode = #tpu.pipeline_mode<synchronous>, transform_indices = @transform_13, window_bounds = array<i64: 24, 2>}, {pipeline_mode = #tpu.pipeline_mode<synchronous>, transform_indices = @transform_14, window_bounds = array<i64: 2, 24>}, {transform_indices = @transform_15, window_bounds = array<i64: 1, 8, 24, 24>}]} {
    %c0 = arith.constant 0 : index
    %c0_0 = arith.constant 0 : index
    %c0_1 = arith.constant 0 : index
    %0 = vector.load %arg2[%c0, %c0_0, %c0_1] : memref<1x4x144xf32, #tpu.memory_space<vmem>>, vector<1x4x144xf32>
    %1 = vector.shape_cast %0 : vector<1x4x144xf32> to vector<4x144xf32>
    %c0_2 = arith.constant 0 : index
    %c0_3 = arith.constant 0 : index
    %2 = vector.load %arg8[%c0_2, %c0_3] : memref<24x12xf32, #tpu.memory_space<vmem>>, vector<24x12xf32>
    %c0_4 = arith.constant 0 : index
    %c0_5 = arith.constant 0 : index
    %3 = vector.load %arg9[%c0_4, %c0_5] : memref<12x24xf32, #tpu.memory_space<vmem>>, vector<12x24xf32>
    %c0_6 = arith.constant 0 : index
    %c0_7 = arith.constant 0 : index
    %c0_8 = arith.constant 0 : index
    %4 = vector.load %arg6[%c0_6, %c0_7, %c0_8] : memref<4x1x4xf32, #tpu.memory_space<vmem>>, vector<1x1x4xf32>
    %5 = vector.shape_cast %4 : vector<1x1x4xf32> to vector<1x4xf32>
    %cst = arith.constant dense<0.000000e+00> : vector<1x144xf32>
    %6 = tpu.matmul %5, %1, %cst {dimension_numbers = #tpu.dot_dimension_numbers<[1], [0], [0], [1], [0, 0, 1, 1], [], []>} : vector<1x4xf32>, vector<4x144xf32>, vector<1x144xf32> -> vector<1x144xf32>
    %c0_9 = arith.constant 0 : index
    %c0_10 = arith.constant 0 : index
    %c0_11 = arith.constant 0 : index
    %7 = vector.load %arg7[%c0_9, %c0_10, %c0_11] : memref<4x1x1xf32, #tpu.memory_space<vmem>>, vector<1x1x1xf32>
    %8 = vector.shape_cast %7 : vector<1x1x1xf32> to vector<1x1xf32>
    %9 = vector.broadcast %8 : vector<1x1xf32> to vector<1x144xf32>
    %10 = arith.addf %6, %9 : vector<1x144xf32>
    %11 = vector.extract_strided_slice %10 {offsets = [0, 0], sizes = [1, 12], strides = [1, 1]} : vector<1x144xf32> to vector<1x12xf32>
    %c0_12 = arith.constant 0 : index
    %c0_13 = arith.constant 0 : index
    %12 = vector.load %arg17[%c0_12, %c0_13] : memref<12x12xf32, #tpu.memory_space<vmem>>, vector<1x12xf32>
    tpu.vector_store %arg17[%c0_12, %c0_13], %11 {strides = array<i32>} : memref<12x12xf32, #tpu.memory_space<vmem>>, vector<1x12xf32>,
    %13 = vector.extract_strided_slice %10 {offsets = [0, 12], sizes = [1, 12], strides = [1, 1]} : vector<1x144xf32> to vector<1x12xf32>
    %c1 = arith.constant 1 : index
    %c0_14 = arith.constant 0 : index
    %14 = vector.load %arg17[%c1, %c0_14] : memref<12x12xf32, #tpu.memory_space<vmem>>, vector<1x12xf32>
    tpu.vector_store %arg17[%c1, %c0_14], %13 {strides = array<i32>} : memref<12x12xf32, #tpu.memory_space<vmem>>, vector<1x12xf32>,
    %15 = vector.extract_strided_slice %10 {offsets = [0, 24], sizes = [1, 12], strides = [1, 1]} : vector<1x144xf32> to vector<1x12xf32>
    %c2 = arith.constant 2 : index
    %c0_15 = arith.constant 0 : index
    %16 = vector.load %arg17[%c2, %c0_15] : memref<12x12xf32, #tpu.memory_space<vmem>>, vector<1x12xf32>
    tpu.vector_store %arg17[%c2, %c0_15], %15 {strides = array<i32>} : memref<12x12xf32, #tpu.memory_space<vmem>>, vector<1x12xf32>,
    %17 = vector.extract_strided_slice %10 {offsets = [0, 36], sizes = [1, 12], strides = [1, 1]} : vector<1x144xf32> to vector<1x12xf32>
    %c3 = arith.constant 3 : index
    %c0_16 = arith.constant 0 : index
    %18 = vector.load %arg17[%c3, %c0_16] : memref<12x12xf32, #tpu.memory_space<vmem>>, vector<1x12xf32>
    tpu.vector_store %arg17[%c3, %c0_16], %17 {strides = array<i32>} : memref<12x12xf32, #tpu.memory_space<vmem>>, vector<1x12xf32>,
    %19 = vector.extract_strided_slice %10 {offsets = [0, 48], sizes = [1, 12], strides = [1, 1]} : vector<1x144xf32> to vector<1x12xf32>
    %c4 = arith.constant 4 : index
    %c0_17 = arith.constant 0 : index
    %20 = vector.load %arg17[%c4, %c0_17] : memref<12x12xf32, #tpu.memory_space<vmem>>, vector<1x12xf32>
    tpu.vector_store %arg17[%c4, %c0_17], %19 {strides = array<i32>} : memref<12x12xf32, #tpu.memory_space<vmem>>, vector<1x12xf32>,
    %21 = vector.extract_strided_slice %10 {offsets = [0, 60], sizes = [1, 12], strides = [1, 1]} : vector<1x144xf32> to vector<1x12xf32>
    %c5 = arith.constant 5 : index
    %c0_18 = arith.constant 0 : index
    %22 = vector.load %arg17[%c5, %c0_18] : memref<12x12xf32, #tpu.memory_space<vmem>>, vector<1x12xf32>
    tpu.vector_store %arg17[%c5, %c0_18], %21 {strides = array<i32>} : memref<12x12xf32, #tpu.memory_space<vmem>>, vector<1x12xf32>,
    %23 = vector.extract_strided_slice %10 {offsets = [0, 72], sizes = [1, 12], strides = [1, 1]} : vector<1x144xf32> to vector<1x12xf32>
    %c6 = arith.constant 6 : index
    %c0_19 = arith.constant 0 : index
    %24 = vector.load %arg17[%c6, %c0_19] : memref<12x12xf32, #tpu.memory_space<vmem>>, vector<1x12xf32>
    tpu.vector_store %arg17[%c6, %c0_19], %23 {strides = array<i32>} : memref<12x12xf32, #tpu.memory_space<vmem>>, vector<1x12xf32>,
    %25 = vector.extract_strided_slice %10 {offsets = [0, 84], sizes = [1, 12], strides = [1, 1]} : vector<1x144xf32> to vector<1x12xf32>
    %c7 = arith.constant 7 : index
    %c0_20 = arith.constant 0 : index
    %26 = vector.load %arg17[%c7, %c0_20] : memref<12x12xf32, #tpu.memory_space<vmem>>, vector<1x12xf32>
    tpu.vector_store %arg17[%c7, %c0_20], %25 {strides = array<i32>} : memref<12x12xf32, #tpu.memory_space<vmem>>, vector<1x12xf32>,
    %27 = vector.extract_strided_slice %10 {offsets = [0, 96], sizes = [1, 12], strides = [1, 1]} : vector<1x144xf32> to vector<1x12xf32>
    %c8 = arith.constant 8 : index
    %c0_21 = arith.constant 0 : index
    %28 = vector.load %arg17[%c8, %c0_21] : memref<12x12xf32, #tpu.memory_space<vmem>>, vector<1x12xf32>
    tpu.vector_store %arg17[%c8, %c0_21], %27 {strides = array<i32>} : memref<12x12xf32, #tpu.memory_space<vmem>>, vector<1x12xf32>,
    %29 = vector.extract_strided_slice %10 {offsets = [0, 108], sizes = [1, 12], strides = [1, 1]} : vector<1x144xf32> to vector<1x12xf32>
    %c9 = arith.constant 9 : index
    %c0_22 = arith.constant 0 : index
    %30 = vector.load %arg17[%c9, %c0_22] : memref<12x12xf32, #tpu.memory_space<vmem>>, vector<1x12xf32>
    tpu.vector_store %arg17[%c9, %c0_22], %29 {strides = array<i32>} : memref<12x12xf32, #tpu.memory_space<vmem>>, vector<1x12xf32>,
    %31 = vector.extract_strided_slice %10 {offsets = [0, 120], sizes = [1, 12], strides = [1, 1]} : vector<1x144xf32> to vector<1x12xf32>
    %c10 = arith.constant 10 : index
    %c0_23 = arith.constant 0 : index
    %32 = vector.load %arg17[%c10, %c0_23] : memref<12x12xf32, #tpu.memory_space<vmem>>, vector<1x12xf32>
    tpu.vector_store %arg17[%c10, %c0_23], %31 {strides = array<i32>} : memref<12x12xf32, #tpu.memory_space<vmem>>, vector<1x12xf32>,
    %33 = vector.extract_strided_slice %10 {offsets = [0, 132], sizes = [1, 12], strides = [1, 1]} : vector<1x144xf32> to vector<1x12xf32>
    %c11 = arith.constant 11 : index
    %c0_24 = arith.constant 0 : index
    %34 = vector.load %arg17[%c11, %c0_24] : memref<12x12xf32, #tpu.memory_space<vmem>>, vector<1x12xf32>
    tpu.vector_store %arg17[%c11, %c0_24], %33 {strides = array<i32>} : memref<12x12xf32, #tpu.memory_space<vmem>>, vector<1x12xf32>,
    %c0_25 = arith.constant 0 : index
    %c0_26 = arith.constant 0 : index
    %35 = vector.load %arg17[%c0_25, %c0_26] : memref<12x12xf32, #tpu.memory_space<vmem>>, vector<12x12xf32>
    %cst_27 = arith.constant dense<0.000000e+00> : vector<24x12xf32>
    %36 = tpu.matmul %2, %35, %cst_27 {dimension_numbers = #tpu.dot_dimension_numbers<[1], [0], [0], [1], [0, 0, 1, 1], [], []>} : vector<24x12xf32>, vector<12x12xf32>, vector<24x12xf32> -> vector<24x12xf32>
    %cst_28 = arith.constant dense<0.000000e+00> : vector<24x24xf32>
    %37 = tpu.matmul %36, %3, %cst_28 {dimension_numbers = #tpu.dot_dimension_numbers<[1], [0], [0], [1], [0, 0, 1, 1], [], []>} : vector<24x12xf32>, vector<12x24xf32>, vector<24x24xf32> -> vector<24x24xf32>
    %c0_29 = arith.constant 0 : index
    %c0_30 = arith.constant 0 : index
    %c0_31 = arith.constant 0 : index
    %c0_32 = arith.constant 0 : index
    %38 = vector.load %arg16[%c0_29, %c0_30, %c0_31, %c0_32] : memref<1x8x24x24xf32, #tpu.memory_space<vmem>>, vector<1x1x24x24xf32>
    %39 = vector.shape_cast %38 : vector<1x1x24x24xf32> to vector<24x24xf32>
    %40 = vector.shape_cast %37 : vector<24x24xf32> to vector<1x1x24x24xf32>
    tpu.vector_store %arg16[%c0_29, %c0_30, %c0_31, %c0_32], %40 {strides = array<i32>} : memref<1x8x24x24xf32, #tpu.memory_space<vmem>>, vector<1x1x24x24xf32>,
    %c0_33 = arith.constant 0 : index
    %c0_34 = arith.constant 0 : index
    %c0_35 = arith.constant 0 : index
    %41 = vector.load %arg3[%c0_33, %c0_34, %c0_35] : memref<1x4x36xf32, #tpu.memory_space<vmem>>, vector<1x4x36xf32>
    %42 = vector.shape_cast %41 : vector<1x4x36xf32> to vector<4x36xf32>
    %c0_36 = arith.constant 0 : index
    %c0_37 = arith.constant 0 : index
    %43 = vector.load %arg10[%c0_36, %c0_37] : memref<24x6xf32, #tpu.memory_space<vmem>>, vector<24x6xf32>
    %c0_38 = arith.constant 0 : index
    %c0_39 = arith.constant 0 : index
    %44 = vector.load %arg11[%c0_38, %c0_39] : memref<6x24xf32, #tpu.memory_space<vmem>>, vector<6x24xf32>
    %c1_40 = arith.constant 1 : index
    %c0_41 = arith.constant 0 : index
    %c0_42 = arith.constant 0 : index
    %45 = vector.load %arg6[%c1_40, %c0_41, %c0_42] : memref<4x1x4xf32, #tpu.memory_space<vmem>>, vector<1x1x4xf32>
    %46 = vector.shape_cast %45 : vector<1x1x4xf32> to vector<1x4xf32>
    %cst_43 = arith.constant dense<0.000000e+00> : vector<1x36xf32>
    %47 = tpu.matmul %46, %42, %cst_43 {dimension_numbers = #tpu.dot_dimension_numbers<[1], [0], [0], [1], [0, 0, 1, 1], [], []>} : vector<1x4xf32>, vector<4x36xf32>, vector<1x36xf32> -> vector<1x36xf32>
    %c1_44 = arith.constant 1 : index
    %c0_45 = arith.constant 0 : index
    %c0_46 = arith.constant 0 : index
    %48 = vector.load %arg7[%c1_44, %c0_45, %c0_46] : memref<4x1x1xf32, #tpu.memory_space<vmem>>, vector<1x1x1xf32>
    %49 = vector.shape_cast %48 : vector<1x1x1xf32> to vector<1x1xf32>
    %50 = vector.broadcast %49 : vector<1x1xf32> to vector<1x36xf32>
    %51 = arith.addf %47, %50 : vector<1x36xf32>
    %52 = vector.extract_strided_slice %51 {offsets = [0, 0], sizes = [1, 6], strides = [1, 1]} : vector<1x36xf32> to vector<1x6xf32>
    %c0_47 = arith.constant 0 : index
    %c0_48 = arith.constant 0 : index
    %53 = vector.load %arg17[%c0_47, %c0_48] : memref<12x12xf32, #tpu.memory_space<vmem>>, vector<1x6xf32>
    tpu.vector_store %arg17[%c0_47, %c0_48], %52 {strides = array<i32>} : memref<12x12xf32, #tpu.memory_space<vmem>>, vector<1x6xf32>,
    %54 = vector.extract_strided_slice %51 {offsets = [0, 6], sizes = [1, 6], strides = [1, 1]} : vector<1x36xf32> to vector<1x6xf32>
    %c1_49 = arith.constant 1 : index
    %c0_50 = arith.constant 0 : index
    %55 = vector.load %arg17[%c1_49, %c0_50] : memref<12x12xf32, #tpu.memory_space<vmem>>, vector<1x6xf32>
    tpu.vector_store %arg17[%c1_49, %c0_50], %54 {strides = array<i32>} : memref<12x12xf32, #tpu.memory_space<vmem>>, vector<1x6xf32>,
    %56 = vector.extract_strided_slice %51 {offsets = [0, 12], sizes = [1, 6], strides = [1, 1]} : vector<1x36xf32> to vector<1x6xf32>
    %c2_51 = arith.constant 2 : index
    %c0_52 = arith.constant 0 : index
    %57 = vector.load %arg17[%c2_51, %c0_52] : memref<12x12xf32, #tpu.memory_space<vmem>>, vector<1x6xf32>
    tpu.vector_store %arg17[%c2_51, %c0_52], %56 {strides = array<i32>} : memref<12x12xf32, #tpu.memory_space<vmem>>, vector<1x6xf32>,
    %58 = vector.extract_strided_slice %51 {offsets = [0, 18], sizes = [1, 6], strides = [1, 1]} : vector<1x36xf32> to vector<1x6xf32>
    %c3_53 = arith.constant 3 : index
    %c0_54 = arith.constant 0 : index
    %59 = vector.load %arg17[%c3_53, %c0_54] : memref<12x12xf32, #tpu.memory_space<vmem>>, vector<1x6xf32>
    tpu.vector_store %arg17[%c3_53, %c0_54], %58 {strides = array<i32>} : memref<12x12xf32, #tpu.memory_space<vmem>>, vector<1x6xf32>,
    %60 = vector.extract_strided_slice %51 {offsets = [0, 24], sizes = [1, 6], strides = [1, 1]} : vector<1x36xf32> to vector<1x6xf32>
    %c4_55 = arith.constant 4 : index
    %c0_56 = arith.constant 0 : index
    %61 = vector.load %arg17[%c4_55, %c0_56] : memref<12x12xf32, #tpu.memory_space<vmem>>, vector<1x6xf32>
    tpu.vector_store %arg17[%c4_55, %c0_56], %60 {strides = array<i32>} : memref<12x12xf32, #tpu.memory_space<vmem>>, vector<1x6xf32>,
    %62 = vector.extract_strided_slice %51 {offsets = [0, 30], sizes = [1, 6], strides = [1, 1]} : vector<1x36xf32> to vector<1x6xf32>
    %c5_57 = arith.constant 5 : index
    %c0_58 = arith.constant 0 : index
    %63 = vector.load %arg17[%c5_57, %c0_58] : memref<12x12xf32, #tpu.memory_space<vmem>>, vector<1x6xf32>
    tpu.vector_store %arg17[%c5_57, %c0_58], %62 {strides = array<i32>} : memref<12x12xf32, #tpu.memory_space<vmem>>, vector<1x6xf32>,
    %c0_59 = arith.constant 0 : index
    %c0_60 = arith.constant 0 : index
    %64 = vector.load %arg17[%c0_59, %c0_60] : memref<12x12xf32, #tpu.memory_space<vmem>>, vector<6x6xf32>
    %cst_61 = arith.constant dense<0.000000e+00> : vector<24x6xf32>
    %65 = tpu.matmul %43, %64, %cst_61 {dimension_numbers = #tpu.dot_dimension_numbers<[1], [0], [0], [1], [0, 0, 1, 1], [], []>} : vector<24x6xf32>, vector<6x6xf32>, vector<24x6xf32> -> vector<24x6xf32>
    %cst_62 = arith.constant dense<0.000000e+00> : vector<24x24xf32>
    %66 = tpu.matmul %65, %44, %cst_62 {dimension_numbers = #tpu.dot_dimension_numbers<[1], [0], [0], [1], [0, 0, 1, 1], [], []>} : vector<24x6xf32>, vector<6x24xf32>, vector<24x24xf32> -> vector<24x24xf32>
    %c0_63 = arith.constant 0 : index
    %c1_64 = arith.constant 1 : index
    %c0_65 = arith.constant 0 : index
    %c0_66 = arith.constant 0 : index
    %67 = vector.load %arg16[%c0_63, %c1_64, %c0_65, %c0_66] : memref<1x8x24x24xf32, #tpu.memory_space<vmem>>, vector<1x1x24x24xf32>
    %68 = vector.shape_cast %67 : vector<1x1x24x24xf32> to vector<24x24xf32>
    %69 = vector.shape_cast %66 : vector<24x24xf32> to vector<1x1x24x24xf32>
    tpu.vector_store %arg16[%c0_63, %c1_64, %c0_65, %c0_66], %69 {strides = array<i32>} : memref<1x8x24x24xf32, #tpu.memory_space<vmem>>, vector<1x1x24x24xf32>,
    %c0_67 = arith.constant 0 : index
    %c0_68 = arith.constant 0 : index
    %c0_69 = arith.constant 0 : index
    %70 = vector.load %arg4[%c0_67, %c0_68, %c0_69] : memref<1x4x16xf32, #tpu.memory_space<vmem>>, vector<1x4x16xf32>
    %71 = vector.shape_cast %70 : vector<1x4x16xf32> to vector<4x16xf32>
    %c0_70 = arith.constant 0 : index
    %c0_71 = arith.constant 0 : index
    %72 = vector.load %arg12[%c0_70, %c0_71] : memref<24x4xf32, #tpu.memory_space<vmem>>, vector<24x4xf32>
    %c0_72 = arith.constant 0 : index
    %c0_73 = arith.constant 0 : index
    %73 = vector.load %arg13[%c0_72, %c0_73] : memref<4x24xf32, #tpu.memory_space<vmem>>, vector<4x24xf32>
    %c2_74 = arith.constant 2 : index
    %c0_75 = arith.constant 0 : index
    %c0_76 = arith.constant 0 : index
    %74 = vector.load %arg6[%c2_74, %c0_75, %c0_76] : memref<4x1x4xf32, #tpu.memory_space<vmem>>, vector<1x1x4xf32>
    %75 = vector.shape_cast %74 : vector<1x1x4xf32> to vector<1x4xf32>
    %cst_77 = arith.constant dense<0.000000e+00> : vector<1x16xf32>
    %76 = tpu.matmul %75, %71, %cst_77 {dimension_numbers = #tpu.dot_dimension_numbers<[1], [0], [0], [1], [0, 0, 1, 1], [], []>} : vector<1x4xf32>, vector<4x16xf32>, vector<1x16xf32> -> vector<1x16xf32>
    %c2_78 = arith.constant 2 : index
    %c0_79 = arith.constant 0 : index
    %c0_80 = arith.constant 0 : index
    %77 = vector.load %arg7[%c2_78, %c0_79, %c0_80] : memref<4x1x1xf32, #tpu.memory_space<vmem>>, vector<1x1x1xf32>
    %78 = vector.shape_cast %77 : vector<1x1x1xf32> to vector<1x1xf32>
    %79 = vector.broadcast %78 : vector<1x1xf32> to vector<1x16xf32>
    %80 = arith.addf %76, %79 : vector<1x16xf32>
    %81 = vector.extract_strided_slice %80 {offsets = [0, 0], sizes = [1, 4], strides = [1, 1]} : vector<1x16xf32> to vector<1x4xf32>
    %c0_81 = arith.constant 0 : index
    %c0_82 = arith.constant 0 : index
    %82 = vector.load %arg17[%c0_81, %c0_82] : memref<12x12xf32, #tpu.memory_space<vmem>>, vector<1x4xf32>
    tpu.vector_store %arg17[%c0_81, %c0_82], %81 {strides = array<i32>} : memref<12x12xf32, #tpu.memory_space<vmem>>, vector<1x4xf32>,
    %83 = vector.extract_strided_slice %80 {offsets = [0, 4], sizes = [1, 4], strides = [1, 1]} : vector<1x16xf32> to vector<1x4xf32>
    %c1_83 = arith.constant 1 : index
    %c0_84 = arith.constant 0 : index
    %84 = vector.load %arg17[%c1_83, %c0_84] : memref<12x12xf32, #tpu.memory_space<vmem>>, vector<1x4xf32>
    tpu.vector_store %arg17[%c1_83, %c0_84], %83 {strides = array<i32>} : memref<12x12xf32, #tpu.memory_space<vmem>>, vector<1x4xf32>,
    %85 = vector.extract_strided_slice %80 {offsets = [0, 8], sizes = [1, 4], strides = [1, 1]} : vector<1x16xf32> to vector<1x4xf32>
    %c2_85 = arith.constant 2 : index
    %c0_86 = arith.constant 0 : index
    %86 = vector.load %arg17[%c2_85, %c0_86] : memref<12x12xf32, #tpu.memory_space<vmem>>, vector<1x4xf32>
    tpu.vector_store %arg17[%c2_85, %c0_86], %85 {strides = array<i32>} : memref<12x12xf32, #tpu.memory_space<vmem>>, vector<1x4xf32>,
    %87 = vector.extract_strided_slice %80 {offsets = [0, 12], sizes = [1, 4], strides = [1, 1]} : vector<1x16xf32> to vector<1x4xf32>
    %c3_87 = arith.constant 3 : index
    %c0_88 = arith.constant 0 : index
    %88 = vector.load %arg17[%c3_87, %c0_88] : memref<12x12xf32, #tpu.memory_space<vmem>>, vector<1x4xf32>
    tpu.vector_store %arg17[%c3_87, %c0_88], %87 {strides = array<i32>} : memref<12x12xf32, #tpu.memory_space<vmem>>, vector<1x4xf32>,
    %c0_89 = arith.constant 0 : index
    %c0_90 = arith.constant 0 : index
    %89 = vector.load %arg17[%c0_89, %c0_90] : memref<12x12xf32, #tpu.memory_space<vmem>>, vector<4x4xf32>
    %cst_91 = arith.constant dense<0.000000e+00> : vector<24x4xf32>
    %90 = tpu.matmul %72, %89, %cst_91 {dimension_numbers = #tpu.dot_dimension_numbers<[1], [0], [0], [1], [0, 0, 1, 1], [], []>} : vector<24x4xf32>, vector<4x4xf32>, vector<24x4xf32> -> vector<24x4xf32>
    %cst_92 = arith.constant dense<0.000000e+00> : vector<24x24xf32>
    %91 = tpu.matmul %90, %73, %cst_92 {dimension_numbers = #tpu.dot_dimension_numbers<[1], [0], [0], [1], [0, 0, 1, 1], [], []>} : vector<24x4xf32>, vector<4x24xf32>, vector<24x24xf32> -> vector<24x24xf32>
    %c0_93 = arith.constant 0 : index
    %c2_94 = arith.constant 2 : index
    %c0_95 = arith.constant 0 : index
    %c0_96 = arith.constant 0 : index
    %92 = vector.load %arg16[%c0_93, %c2_94, %c0_95, %c0_96] : memref<1x8x24x24xf32, #tpu.memory_space<vmem>>, vector<1x1x24x24xf32>
    %93 = vector.shape_cast %92 : vector<1x1x24x24xf32> to vector<24x24xf32>
    %94 = vector.shape_cast %91 : vector<24x24xf32> to vector<1x1x24x24xf32>
    tpu.vector_store %arg16[%c0_93, %c2_94, %c0_95, %c0_96], %94 {strides = array<i32>} : memref<1x8x24x24xf32, #tpu.memory_space<vmem>>, vector<1x1x24x24xf32>,
    %c0_97 = arith.constant 0 : index
    %c0_98 = arith.constant 0 : index
    %c0_99 = arith.constant 0 : index
    %95 = vector.load %arg5[%c0_97, %c0_98, %c0_99] : memref<1x4x4xf32, #tpu.memory_space<vmem>>, vector<1x4x4xf32>
    %96 = vector.shape_cast %95 : vector<1x4x4xf32> to vector<4x4xf32>
    %c0_100 = arith.constant 0 : index
    %c0_101 = arith.constant 0 : index
    %97 = vector.load %arg14[%c0_100, %c0_101] : memref<24x2xf32, #tpu.memory_space<vmem>>, vector<24x2xf32>
    %c0_102 = arith.constant 0 : index
    %c0_103 = arith.constant 0 : index
    %98 = vector.load %arg15[%c0_102, %c0_103] : memref<2x24xf32, #tpu.memory_space<vmem>>, vector<2x24xf32>
    %c3_104 = arith.constant 3 : index
    %c0_105 = arith.constant 0 : index
    %c0_106 = arith.constant 0 : index
    %99 = vector.load %arg6[%c3_104, %c0_105, %c0_106] : memref<4x1x4xf32, #tpu.memory_space<vmem>>, vector<1x1x4xf32>
    %100 = vector.shape_cast %99 : vector<1x1x4xf32> to vector<1x4xf32>
    %cst_107 = arith.constant dense<0.000000e+00> : vector<1x4xf32>
    %101 = tpu.matmul %100, %96, %cst_107 {dimension_numbers = #tpu.dot_dimension_numbers<[1], [0], [0], [1], [0, 0, 1, 1], [], []>} : vector<1x4xf32>, vector<4x4xf32>, vector<1x4xf32> -> vector<1x4xf32>
    %c3_108 = arith.constant 3 : index
    %c0_109 = arith.constant 0 : index
    %c0_110 = arith.constant 0 : index
    %102 = vector.load %arg7[%c3_108, %c0_109, %c0_110] : memref<4x1x1xf32, #tpu.memory_space<vmem>>, vector<1x1x1xf32>
    %103 = vector.shape_cast %102 : vector<1x1x1xf32> to vector<1x1xf32>
    %104 = vector.broadcast %103 : vector<1x1xf32> to vector<1x4xf32>
    %105 = arith.addf %101, %104 : vector<1x4xf32>
    %106 = vector.extract_strided_slice %105 {offsets = [0, 0], sizes = [1, 2], strides = [1, 1]} : vector<1x4xf32> to vector<1x2xf32>
    %c0_111 = arith.constant 0 : index
    %c0_112 = arith.constant 0 : index
    %107 = vector.load %arg17[%c0_111, %c0_112] : memref<12x12xf32, #tpu.memory_space<vmem>>, vector<1x2xf32>
    tpu.vector_store %arg17[%c0_111, %c0_112], %106 {strides = array<i32>} : memref<12x12xf32, #tpu.memory_space<vmem>>, vector<1x2xf32>,
    %108 = vector.extract_strided_slice %105 {offsets = [0, 2], sizes = [1, 2], strides = [1, 1]} : vector<1x4xf32> to vector<1x2xf32>
    %c1_113 = arith.constant 1 : index
    %c0_114 = arith.constant 0 : index
    %109 = vector.load %arg17[%c1_113, %c0_114] : memref<12x12xf32, #tpu.memory_space<vmem>>, vector<1x2xf32>
    tpu.vector_store %arg17[%c1_113, %c0_114], %108 {strides = array<i32>} : memref<12x12xf32, #tpu.memory_space<vmem>>, vector<1x2xf32>,
    %c0_115 = arith.constant 0 : index
    %c0_116 = arith.constant 0 : index
    %110 = vector.load %arg17[%c0_115, %c0_116] : memref<12x12xf32, #tpu.memory_space<vmem>>, vector<2x2xf32>
    %cst_117 = arith.constant dense<0.000000e+00> : vector<24x2xf32>
    %111 = tpu.matmul %97, %110, %cst_117 {dimension_numbers = #tpu.dot_dimension_numbers<[1], [0], [0], [1], [0, 0, 1, 1], [], []>} : vector<24x2xf32>, vector<2x2xf32>, vector<24x2xf32> -> vector<24x2xf32>
    %cst_118 = arith.constant dense<0.000000e+00> : vector<24x24xf32>
    %112 = tpu.matmul %111, %98, %cst_118 {dimension_numbers = #tpu.dot_dimension_numbers<[1], [0], [0], [1], [0, 0, 1, 1], [], []>} : vector<24x2xf32>, vector<2x24xf32>, vector<24x24xf32> -> vector<24x24xf32>
    %c0_119 = arith.constant 0 : index
    %c3_120 = arith.constant 3 : index
    %c0_121 = arith.constant 0 : index
    %c0_122 = arith.constant 0 : index
    %113 = vector.load %arg16[%c0_119, %c3_120, %c0_121, %c0_122] : memref<1x8x24x24xf32, #tpu.memory_space<vmem>>, vector<1x1x24x24xf32>
    %114 = vector.shape_cast %113 : vector<1x1x24x24xf32> to vector<24x24xf32>
    %115 = vector.shape_cast %112 : vector<24x24xf32> to vector<1x1x24x24xf32>
    tpu.vector_store %arg16[%c0_119, %c3_120, %c0_121, %c0_122], %115 {strides = array<i32>} : memref<1x8x24x24xf32, #tpu.memory_space<vmem>>, vector<1x1x24x24xf32>,
    %c0_123 = arith.constant 0 : index
    %c0_124 = arith.constant 0 : index
    %c0_125 = arith.constant 0 : index
    %c0_126 = arith.constant 0 : index
    %116 = vector.load %arg1[%c0_123, %c0_124, %c0_125, %c0_126] : memref<1x4x24x24xf32, #tpu.memory_space<vmem>>, vector<1x4x24x24xf32>
    %117 = vector.shape_cast %116 : vector<1x4x24x24xf32> to vector<4x24x24xf32>
    %c0_127 = arith.constant 0 : index
    %c4_128 = arith.constant 4 : index
    %c0_129 = arith.constant 0 : index
    %c0_130 = arith.constant 0 : index
    %118 = vector.load %arg16[%c0_127, %c4_128, %c0_129, %c0_130] : memref<1x8x24x24xf32, #tpu.memory_space<vmem>>, vector<1x4x24x24xf32>
    %119 = vector.shape_cast %118 : vector<1x4x24x24xf32> to vector<4x24x24xf32>
    %120 = vector.shape_cast %117 : vector<4x24x24xf32> to vector<1x4x24x24xf32>
    tpu.vector_store %arg16[%c0_127, %c4_128, %c0_129, %c0_130], %120 {strides = array<i32>} : memref<1x8x24x24xf32, #tpu.memory_space<vmem>>, vector<1x4x24x24xf32>,
    return
  }
  func.func @transform_0(%arg0: i32) -> (i32, i32, i32, i32) {
    %c0_i32 = arith.constant 0 : i32
    %c0_i32_0 = arith.constant 0 : i32
    %c0_i32_1 = arith.constant 0 : i32
    %c0_i32_2 = arith.constant 0 : i32
    return %arg0, %c0_i32, %c0_i32_0, %c0_i32_1 : i32, i32, i32, i32
  }
  func.func @transform_1(%arg0: i32) -> (i32, i32, i32) {
    %c0_i32 = arith.constant 0 : i32
    %c0_i32_0 = arith.constant 0 : i32
    %c0_i32_1 = arith.constant 0 : i32
    return %arg0, %c0_i32, %c0_i32_0 : i32, i32, i32
  }
  func.func @transform_2(%arg0: i32) -> (i32, i32, i32) {
    %c0_i32 = arith.constant 0 : i32
    %c0_i32_0 = arith.constant 0 : i32
    %c0_i32_1 = arith.constant 0 : i32
    return %arg0, %c0_i32, %c0_i32_0 : i32, i32, i32
  }
  func.func @transform_3(%arg0: i32) -> (i32, i32, i32) {
    %c0_i32 = arith.constant 0 : i32
    %c0_i32_0 = arith.constant 0 : i32
    %c0_i32_1 = arith.constant 0 : i32
    return %arg0, %c0_i32, %c0_i32_0 : i32, i32, i32
  }
  func.func @transform_4(%arg0: i32) -> (i32, i32, i32) {
    %c0_i32 = arith.constant 0 : i32
    %c0_i32_0 = arith.constant 0 : i32
    %c0_i32_1 = arith.constant 0 : i32
    return %arg0, %c0_i32, %c0_i32_0 : i32, i32, i32
  }
  func.func @transform_5(%arg0: i32) -> (i32, i32, i32) {
    %c0_i32 = arith.constant 0 : i32
    %c0_i32_0 = arith.constant 0 : i32
    %c0_i32_1 = arith.constant 0 : i32
    %c0_i32_2 = arith.constant 0 : i32
    return %c0_i32, %c0_i32_0, %c0_i32_1 : i32, i32, i32
  }
  func.func @transform_6(%arg0: i32) -> (i32, i32, i32) {
    %c0_i32 = arith.constant 0 : i32
    %c0_i32_0 = arith.constant 0 : i32
    %c0_i32_1 = arith.constant 0 : i32
    %c0_i32_2 = arith.constant 0 : i32
    return %c0_i32, %c0_i32_0, %c0_i32_1 : i32, i32, i32
  }
  func.func @transform_7(%arg0: i32) -> (i32, i32) {
    %c0_i32 = arith.constant 0 : i32
    %c0_i32_0 = arith.constant 0 : i32
    %c0_i32_1 = arith.constant 0 : i32
    return %c0_i32, %c0_i32_0 : i32, i32
  }
  func.func @transform_8(%arg0: i32) -> (i32, i32) {
    %c0_i32 = arith.constant 0 : i32
    %c0_i32_0 = arith.constant 0 : i32
    %c0_i32_1 = arith.constant 0 : i32
    return %c0_i32, %c0_i32_0 : i32, i32
  }
  func.func @transform_9(%arg0: i32) -> (i32, i32) {
    %c0_i32 = arith.constant 0 : i32
    %c0_i32_0 = arith.constant 0 : i32
    %c0_i32_1 = arith.constant 0 : i32
    return %c0_i32, %c0_i32_0 : i32, i32
  }
  func.func @transform_10(%arg0: i32) -> (i32, i32) {
    %c0_i32 = arith.constant 0 : i32
    %c0_i32_0 = arith.constant 0 : i32
    %c0_i32_1 = arith.constant 0 : i32
    return %c0_i32, %c0_i32_0 : i32, i32
  }
  func.func @transform_11(%arg0: i32) -> (i32, i32) {
    %c0_i32 = arith.constant 0 : i32
    %c0_i32_0 = arith.constant 0 : i32
    %c0_i32_1 = arith.constant 0 : i32
    return %c0_i32, %c0_i32_0 : i32, i32
  }
  func.func @transform_12(%arg0: i32) -> (i32, i32) {
    %c0_i32 = arith.constant 0 : i32
    %c0_i32_0 = arith.constant 0 : i32
    %c0_i32_1 = arith.constant 0 : i32
    return %c0_i32, %c0_i32_0 : i32, i32
  }
  func.func @transform_13(%arg0: i32) -> (i32, i32) {
    %c0_i32 = arith.constant 0 : i32
    %c0_i32_0 = arith.constant 0 : i32
    %c0_i32_1 = arith.constant 0 : i32
    return %c0_i32, %c0_i32_0 : i32, i32
  }
  func.func @transform_14(%arg0: i32) -> (i32, i32) {
    %c0_i32 = arith.constant 0 : i32
    %c0_i32_0 = arith.constant 0 : i32
    %c0_i32_1 = arith.constant 0 : i32
    return %c0_i32, %c0_i32_0 : i32, i32
  }
  func.func @transform_15(%arg0: i32) -> (i32, i32, i32, i32) {
    %c0_i32 = arith.constant 0 : i32
    %c0_i32_0 = arith.constant 0 : i32
    %c0_i32_1 = arith.constant 0 : i32
    %c0_i32_2 = arith.constant 0 : i32
    return %arg0, %c0_i32, %c0_i32_0, %c0_i32_1 : i32, i32, i32, i32
  }
}

</mosaic_0001>

<llo_original>
// kernel: spp_block.1
$region0: #{spp_block.1}
  #allocation0 [shape = 'u32[]', space=smem, size = 0x4, offset = 0x4, fixed_abs, tag = 'smem constant byte address 0x4 - core index']
  #allocation1 [shape = 'u32[144,128]{1,0:T(1,128)}', space=vmem, size = 0x12000, scoped, tag = 'internal scratch']
  #allocation2 [shape = 'f32[12,12]{1,0:T(8,128)}', space=vmem, size = 0x2000, scoped, tag = 'scratch operand']
  %s0 = inlined_call_operand.vmem [shape: f32[2,4,24,24], index: 0, kind: input, shape index: {}]
  %s1 = inlined_call_operand.vmem [shape: f32[2,4,144], index: 1, kind: input, shape index: {}]
  %s2 = inlined_call_operand.vmem [shape: f32[2,4,36], index: 2, kind: input, shape index: {}]
  %s3 = inlined_call_operand.vmem [shape: f32[2,4,16], index: 3, kind: input, shape index: {}]
  %s4 = inlined_call_operand.vmem [shape: f32[2,4,4], index: 4, kind: input, shape index: {}]
  %s5 = inlined_call_operand.vmem [shape: f32[4,1,4], index: 5, kind: input, shape index: {}]
  %s6 = inlined_call_operand.vmem [shape: f32[4,1,1], index: 6, kind: input, shape index: {}]
  %s7 = inlined_call_operand.vmem [shape: f32[24,12], index: 7, kind: input, shape index: {}]
  %s8 = inlined_call_operand.vmem [shape: f32[12,24], index: 8, kind: input, shape index: {}]
  %s9 = inlined_call_operand.vmem [shape: f32[24,6], index: 9, kind: input, shape index: {}]
  %s10 = inlined_call_operand.vmem [shape: f32[6,24], index: 10, kind: input, shape index: {}]
  %s11 = inlined_call_operand.vmem [shape: f32[24,4], index: 11, kind: input, shape index: {}]
  %s12 = inlined_call_operand.vmem [shape: f32[4,24], index: 12, kind: input, shape index: {}]
  %s13 = inlined_call_operand.vmem [shape: f32[24,2], index: 13, kind: input, shape index: {}]
  %s14 = inlined_call_operand.vmem [shape: f32[2,24], index: 14, kind: input, shape index: {}]
  %s15 = inlined_call_operand.hbm [shape: f32[2,8,24,24], index: 15, kind: output, shape index: {}]
  %s16 = sld [smem:[#allocation0]]
  $region93: #{spp_block.1} parent=0
    _
  %s18 = ssub.s32 1, %s16
  %s19 = scalar_select 0, %s18, %s16
  $region1: #{spp_block.1} parent=0
    #allocation3 [shape = 'u8[196608]{0}', space=vmem, size = 0x30000, scoped, tag = 'output window, operand 0']
    #allocation4 [shape = 's32[2]{0}', space=sflag, size = 0x8, scoped, tag = 'scoped memory for spp_block.1']
    %20 = vsyncpa [#allocation4], 0
    %s21 = scalar_lea.sflag [#allocation4], 1
    %22 = vsyncpa %s21, 0
    loop: start=0, step=1, limit=4
    $region2: #{spp_block.1} parent=1 // loop_pre_header
      _
    $region3: #{spp_block.1} parent=1 // loop_header
      %s24 = sphi 0, %s28
      %p25 = scmp.ge.s32.totalorder %s24, 4
      %s34 = sphi 0, %s36
      %s37 = sphi 0, %s34
      %s38 = sphi 0, %s37
      %s54 = sphi 0, %s38
      %s60 = sphi 0, %s62
      %s63 = sphi 0, %s60
      %s64 = sphi 0, %s63
      %s80 = sphi 0, %s64
      %s86 = sphi 0, %s88
      %s89 = sphi 0, %s86
      %s90 = sphi 0, %s89
      %s106 = sphi 0, %s90
      %s112 = sphi 0, %s114
      %s115 = sphi 0, %s112
      %s116 = sphi 0, %s115
      %s132 = sphi 0, %s116
      %s138 = sphi 0, %s140
      %s141 = sphi 0, %s138
      %s142 = sphi 0, %s141
      %s158 = sphi 0, %s142
      %s162 = sphi 0, %s162
      %s164 = sphi 0, %s162
      %s165 = sphi 0, %s164
      %s179 = sphi 0, %s165
      %s183 = sphi 0, %s183
      %s185 = sphi 0, %s183
      %s186 = sphi 0, %s185
      %s200 = sphi 0, %s186
      %s204 = sphi 0, %s204
      %s206 = sphi 0, %s204
      %s207 = sphi 0, %s206
      %s221 = sphi 0, %s207
      %s225 = sphi 0, %s225
      %s227 = sphi 0, %s225
      %s228 = sphi 0, %s227
      %s242 = sphi 0, %s228
      %s246 = sphi 0, %s246
      %s248 = sphi 0, %s246
      %s249 = sphi 0, %s248
      %s263 = sphi 0, %s249
      %s267 = sphi 0, %s267
      %s269 = sphi 0, %s267
      %s270 = sphi 0, %s269
      %s284 = sphi 0, %s270
      %s288 = sphi 0, %s288
      %s290 = sphi 0, %s288
      %s291 = sphi 0, %s290
      %s305 = sphi 0, %s291
      %s309 = sphi 0, %s309
      %s311 = sphi 0, %s309
      %s312 = sphi 0, %s311
      %s326 = sphi 0, %s312
      %s330 = sphi 0, %s330
      %s332 = sphi 0, %s330
      %s333 = sphi 0, %s332
      %s347 = sphi 0, %s333
      %s351 = sphi 0, %s351
      %s353 = sphi 0, %s351
      %s354 = sphi 0, %s353
      %s368 = sphi 0, %s354
      %s374 = sphi 0, %s376
      %s377 = sphi 0, %s374
      %s378 = sphi 0, %s377
      %s394 = sphi 0, %s378
    $region4: #{spp_block.1} parent=1 // loop_header_branch
      %27 = sbr.rel (%p25) target = $region8
    $region5: #{spp_block.1} parent=1 // loop_body
      %s29 = ssub.s32 %s24, 1
      %s30 = ssub.s32 %s24, 2
      %s31 = sadd.s32 %s24, 1
      %s32 = ssub.s32 %s24, %s31
      %p33 = scmp.eq.s32.totalorder %s32, 0
      %s35 = sadd.s32 %s34, 1
      %s36 = scalar_select %p33, %s34, %s35
      %p39 = pneg %p33
      %p40 = scmp.eq.s32.totalorder %s24, 1
      %p41 = por %p39, %p40
      %p42 = scmp.ne.s32.totalorder %s34, %s37
      %p43 = scmp.eq.s32.totalorder %s24, 0
      %p44 = por %p42, %p43
      %p45 = scmp.ne.s32.totalorder %s34, %s37
      %p46 = scmp.eq.s32.totalorder %s29, 1
      %p47 = por %p45, %p46
      %p48 = scmp.ne.s32.totalorder %s37, %s38
      %p49 = scmp.eq.s32.totalorder %s29, 0
      %p50 = por %p48, %p49
      %p51 = scmp.ne.s32.totalorder %s37, %s38
      %p52 = scmp.eq.s32.totalorder %s30, 1
      %p53 = por %p51, %p52
      %p55 = scmp.ne.s32.totalorder %s38, %s54
      %p56 = scmp.eq.s32.totalorder %s30, 0
      %p57 = por %p55, %p56
      %s58 = ssub.s32 %s24, %s31
      %p59 = scmp.eq.s32.totalorder %s58, 0
      %s61 = sadd.s32 %s60, 1
      %s62 = scalar_select %p59, %s60, %s61
      %p65 = pneg %p59
      %p66 = scmp.eq.s32.totalorder %s24, 1
      %p67 = por %p65, %p66
      %p68 = scmp.ne.s32.totalorder %s60, %s63
      %p69 = scmp.eq.s32.totalorder %s24, 0
      %p70 = por %p68, %p69
      %p71 = scmp.ne.s32.totalorder %s60, %s63
      %p72 = scmp.eq.s32.totalorder %s29, 1
      %p73 = por %p71, %p72
      %p74 = scmp.ne.s32.totalorder %s63, %s64
      %p75 = scmp.eq.s32.totalorder %s29, 0
      %p76 = por %p74, %p75
      %p77 = scmp.ne.s32.totalorder %s63, %s64
      %p78 = scmp.eq.s32.totalorder %s30, 1
      %p79 = por %p77, %p78
      %p81 = scmp.ne.s32.totalorder %s64, %s80
      %p82 = scmp.eq.s32.totalorder %s30, 0
      %p83 = por %p81, %p82
      %s84 = ssub.s32 %s24, %s31
      %p85 = scmp.eq.s32.totalorder %s84, 0
      %s87 = sadd.s32 %s86, 1
      %s88 = scalar_select %p85, %s86, %s87
      %p91 = pneg %p85
      %p92 = scmp.eq.s32.totalorder %s24, 1
      %p93 = por %p91, %p92
      %p94 = scmp.ne.s32.totalorder %s86, %s89
      %p95 = scmp.eq.s32.totalorder %s24, 0
      %p96 = por %p94, %p95
      %p97 = scmp.ne.s32.totalorder %s86, %s89
      %p98 = scmp.eq.s32.totalorder %s29, 1
      %p99 = por %p97, %p98
      %p100 = scmp.ne.s32.totalorder %s89, %s90
      %p101 = scmp.eq.s32.totalorder %s29, 0
      %p102 = por %p100, %p101
      %p103 = scmp.ne.s32.totalorder %s89, %s90
      %p104 = scmp.eq.s32.totalorder %s30, 1
      %p105 = por %p103, %p104
      %p107 = scmp.ne.s32.totalorder %s90, %s106
      %p108 = scmp.eq.s32.totalorder %s30, 0
      %p109 = por %p107, %p108
      %s110 = ssub.s32 %s24, %s31
      %p111 = scmp.eq.s32.totalorder %s110, 0
      %s113 = sadd.s32 %s112, 1
      %s114 = scalar_select %p111, %s112, %s113
      %p117 = pneg %p111
      %p118 = scmp.eq.s32.totalorder %s24, 1
      %p119 = por %p117, %p118
      %p120 = scmp.ne.s32.totalorder %s112, %s115
      %p121 = scmp.eq.s32.totalorder %s24, 0
      %p122 = por %p120, %p121
      %p123 = scmp.ne.s32.totalorder %s112, %s115
      %p124 = scmp.eq.s32.totalorder %s29, 1
      %p125 = por %p123, %p124
      %p126 = scmp.ne.s32.totalorder %s115, %s116
      %p127 = scmp.eq.s32.totalorder %s29, 0
      %p128 = por %p126, %p127
      %p129 = scmp.ne.s32.totalorder %s115, %s116
      %p130 = scmp.eq.s32.totalorder %s30, 1
      %p131 = por %p129, %p130
      %p133 = scmp.ne.s32.totalorder %s116, %s132
      %p134 = scmp.eq.s32.totalorder %s30, 0
      %p135 = por %p133, %p134
      %s136 = ssub.s32 %s24, %s31
      %p137 = scmp.eq.s32.totalorder %s136, 0
      %s139 = sadd.s32 %s138, 1
      %s140 = scalar_select %p137, %s138, %s139
      %p143 = pneg %p137
      %p144 = scmp.eq.s32.totalorder %s24, 1
      %p145 = por %p143, %p144
      %p146 = scmp.ne.s32.totalorder %s138, %s141
      %p147 = scmp.eq.s32.totalorder %s24, 0
      %p148 = por %p146, %p147
      %p149 = scmp.ne.s32.totalorder %s138, %s141
      %p150 = scmp.eq.s32.totalorder %s29, 1
      %p151 = por %p149, %p150
      %p152 = scmp.ne.s32.totalorder %s141, %s142
      %p153 = scmp.eq.s32.totalorder %s29, 0
      %p154 = por %p152, %p153
      %p155 = scmp.ne.s32.totalorder %s141, %s142
      %p156 = scmp.eq.s32.totalorder %s30, 1
      %p157 = por %p155, %p156
      %p159 = scmp.ne.s32.totalorder %s142, %s158
      %p160 = scmp.eq.s32.totalorder %s30, 0
      %p161 = por %p159, %p160
      %s163 = sadd.s32 %s162, 1
      %p166 = scmp.eq.s32.totalorder %s24, 1
      %p167 = scmp.ne.s32.totalorder %s162, %s164
      %p168 = scmp.eq.s32.totalorder %s24, 0
      %p169 = por %p167, %p168
      %p170 = scmp.ne.s32.totalorder %s162, %s164
      %p171 = scmp.eq.s32.totalorder %s29, 1
      %p172 = por %p170, %p171
      %p173 = scmp.ne.s32.totalorder %s164, %s165
      %p174 = scmp.eq.s32.totalorder %s29, 0
      %p175 = por %p173, %p174
      %p176 = scmp.ne.s32.totalorder %s164, %s165
      %p177 = scmp.eq.s32.totalorder %s30, 1
      %p178 = por %p176, %p177
      %p180 = scmp.ne.s32.totalorder %s165, %s179
      %p181 = scmp.eq.s32.totalorder %s30, 0
      %p182 = por %p180, %p181
      %s184 = sadd.s32 %s183, 1
      %p187 = scmp.eq.s32.totalorder %s24, 1
      %p188 = scmp.ne.s32.totalorder %s183, %s185
      %p189 = scmp.eq.s32.totalorder %s24, 0
      %p190 = por %p188, %p189
      %p191 = scmp.ne.s32.totalorder %s183, %s185
      %p192 = scmp.eq.s32.totalorder %s29, 1
      %p193 = por %p191, %p192
      %p194 = scmp.ne.s32.totalorder %s185, %s186
      %p195 = scmp.eq.s32.totalorder %s29, 0
      %p196 = por %p194, %p195
      %p197 = scmp.ne.s32.totalorder %s185, %s186
      %p198 = scmp.eq.s32.totalorder %s30, 1
      %p199 = por %p197, %p198
      %p201 = scmp.ne.s32.totalorder %s186, %s200
      %p202 = scmp.eq.s32.totalorder %s30, 0
      %p203 = por %p201, %p202
      %s205 = sadd.s32 %s204, 1
      %p208 = scmp.eq.s32.totalorder %s24, 1
      %p209 = scmp.ne.s32.totalorder %s204, %s206
      %p210 = scmp.eq.s32.totalorder %s24, 0
      %p211 = por %p209, %p210
      %p212 = scmp.ne.s32.totalorder %s204, %s206
      %p213 = scmp.eq.s32.totalorder %s29, 1
      %p214 = por %p212, %p213
      %p215 = scmp.ne.s32.totalorder %s206, %s207
      %p216 = scmp.eq.s32.totalorder %s29, 0
      %p217 = por %p215, %p216
      %p218 = scmp.ne.s32.totalorder %s206, %s207
      %p219 = scmp.eq.s32.totalorder %s30, 1
      %p220 = por %p218, %p219
      %p222 = scmp.ne.s32.totalorder %s207, %s221
      %p223 = scmp.eq.s32.totalorder %s30, 0
      %p224 = por %p222, %p223
      %s226 = sadd.s32 %s225, 1
      %p229 = scmp.eq.s32.totalorder %s24, 1
      %p230 = scmp.ne.s32.totalorder %s225, %s227
      %p231 = scmp.eq.s32.totalorder %s24, 0
      %p232 = por %p230, %p231
      %p233 = scmp.ne.s32.totalorder %s225, %s227
      %p234 = scmp.eq.s32.totalorder %s29, 1
      %p235 = por %p233, %p234
      %p236 = scmp.ne.s32.totalorder %s227, %s228
      %p237 = scmp.eq.s32.totalorder %s29, 0
      %p238 = por %p236, %p237
      %p239 = scmp.ne.s32.totalorder %s227, %s228
      %p240 = scmp.eq.s32.totalorder %s30, 1
      %p241 = por %p239, %p240
      %p243 = scmp.ne.s32.totalorder %s228, %s242
      %p244 = scmp.eq.s32.totalorder %s30, 0
      %p245 = por %p243, %p244
      %s247 = sadd.s32 %s246, 1
      %p250 = scmp.eq.s32.totalorder %s24, 1
      %p251 = scmp.ne.s32.totalorder %s246, %s248
      %p252 = scmp.eq.s32.totalorder %s24, 0
      %p253 = por %p251, %p252
      %p254 = scmp.ne.s32.totalorder %s246, %s248
      %p255 = scmp.eq.s32.totalorder %s29, 1
      %p256 = por %p254, %p255
      %p257 = scmp.ne.s32.totalorder %s248, %s249
      %p258 = scmp.eq.s32.totalorder %s29, 0
      %p259 = por %p257, %p258
      %p260 = scmp.ne.s32.totalorder %s248, %s249
      %p261 = scmp.eq.s32.totalorder %s30, 1
      %p262 = por %p260, %p261
      %p264 = scmp.ne.s32.totalorder %s249, %s263
      %p265 = scmp.eq.s32.totalorder %s30, 0
      %p266 = por %p264, %p265
      %s268 = sadd.s32 %s267, 1
      %p271 = scmp.eq.s32.totalorder %s24, 1
      %p272 = scmp.ne.s32.totalorder %s267, %s269
      %p273 = scmp.eq.s32.totalorder %s24, 0
      %p274 = por %p272, %p273
      %p275 = scmp.ne.s32.totalorder %s267, %s269
      %p276 = scmp.eq.s32.totalorder %s29, 1
      %p277 = por %p275, %p276
      %p278 = scmp.ne.s32.totalorder %s269, %s270
      %p279 = scmp.eq.s32.totalorder %s29, 0
      %p280 = por %p278, %p279
      %p281 = scmp.ne.s32.totalorder %s269, %s270
      %p282 = scmp.eq.s32.totalorder %s30, 1
      %p283 = por %p281, %p282
      %p285 = scmp.ne.s32.totalorder %s270, %s284
      %p286 = scmp.eq.s32.totalorder %s30, 0
      %p287 = por %p285, %p286
      %s289 = sadd.s32 %s288, 1
      %p292 = scmp.eq.s32.totalorder %s24, 1
      %p293 = scmp.ne.s32.totalorder %s288, %s290
      %p294 = scmp.eq.s32.totalorder %s24, 0
      %p295 = por %p293, %p294
      %p296 = scmp.ne.s32.totalorder %s288, %s290
      %p297 = scmp.eq.s32.totalorder %s29, 1
      %p298 = por %p296, %p297
      %p299 = scmp.ne.s32.totalorder %s290, %s291
      %p300 = scmp.eq.s32.totalorder %s29, 0
      %p301 = por %p299, %p300
      %p302 = scmp.ne.s32.totalorder %s290, %s291
      %p303 = scmp.eq.s32.totalorder %s30, 1
      %p304 = por %p302, %p303
      %p306 = scmp.ne.s32.totalorder %s291, %s305
      %p307 = scmp.eq.s32.totalorder %s30, 0
      %p308 = por %p306, %p307
      %s310 = sadd.s32 %s309, 1
      %p313 = scmp.eq.s32.totalorder %s24, 1
      %p314 = scmp.ne.s32.totalorder %s309, %s311
      %p315 = scmp.eq.s32.totalorder %s24, 0
      %p316 = por %p314, %p315
      %p317 = scmp.ne.s32.totalorder %s309, %s311
      %p318 = scmp.eq.s32.totalorder %s29, 1
      %p319 = por %p317, %p318
      %p320 = scmp.ne.s32.totalorder %s311, %s312
      %p321 = scmp.eq.s32.totalorder %s29, 0
      %p322 = por %p320, %p321
      %p323 = scmp.ne.s32.totalorder %s311, %s312
      %p324 = scmp.eq.s32.totalorder %s30, 1
      %p325 = por %p323, %p324
      %p327 = scmp.ne.s32.totalorder %s312, %s326
      %p328 = scmp.eq.s32.totalorder %s30, 0
      %p329 = por %p327, %p328
      %s331 = sadd.s32 %s330, 1
      %p334 = scmp.eq.s32.totalorder %s24, 1
      %p335 = scmp.ne.s32.totalorder %s330, %s332
      %p336 = scmp.eq.s32.totalorder %s24, 0
      %p337 = por %p335, %p336
      %p338 = scmp.ne.s32.totalorder %s330, %s332
      %p339 = scmp.eq.s32.totalorder %s29, 1
      %p340 = por %p338, %p339
      %p341 = scmp.ne.s32.totalorder %s332, %s333
      %p342 = scmp.eq.s32.totalorder %s29, 0
      %p343 = por %p341, %p342
      %p344 = scmp.ne.s32.totalorder %s332, %s333
      %p345 = scmp.eq.s32.totalorder %s30, 1
      %p346 = por %p344, %p345
      %p348 = scmp.ne.s32.totalorder %s333, %s347
      %p349 = scmp.eq.s32.totalorder %s30, 0
      %p350 = por %p348, %p349
      %s352 = sadd.s32 %s351, 1
      %p355 = scmp.eq.s32.totalorder %s24, 1
      %p356 = scmp.ne.s32.totalorder %s351, %s353
      %p357 = scmp.eq.s32.totalorder %s24, 0
      %p358 = por %p356, %p357
      %p359 = scmp.ne.s32.totalorder %s351, %s353
      %p360 = scmp.eq.s32.totalorder %s29, 1
      %p361 = por %p359, %p360
      %p362 = scmp.ne.s32.totalorder %s353, %s354
      %p363 = scmp.eq.s32.totalorder %s29, 0
      %p364 = por %p362, %p363
      %p365 = scmp.ne.s32.totalorder %s353, %s354
      %p366 = scmp.eq.s32.totalorder %s30, 1
      %p367 = por %p365, %p366
      %p369 = scmp.ne.s32.totalorder %s354, %s368
      %p370 = scmp.eq.s32.totalorder %s30, 0
      %p371 = por %p369, %p370
      %s372 = ssub.s32 %s24, %s31
      %p373 = scmp.eq.s32.totalorder %s372, 0
      %s375 = sadd.s32 %s374, 1
      %s376 = scalar_select %p373, %s374, %s375
      %p379 = pneg %p373
      %p380 = scmp.eq.s32.totalorder %s24, 1
      %p381 = por %p379, %p380
      %p382 = scmp.ne.s32.totalorder %s374, %s377
      %p383 = scmp.eq.s32.totalorder %s24, 0
      %p384 = por %p382, %p383
      %p385 = scmp.ne.s32.totalorder %s374, %s377
      %p386 = scmp.eq.s32.totalorder %s29, 1
      %p387 = por %p385, %p386
      %p388 = scmp.ne.s32.totalorder %s377, %s378
      %p389 = scmp.eq.s32.totalorder %s29, 0
      %p390 = por %p388, %p389
      %p391 = scmp.ne.s32.totalorder %s377, %s378
      %p392 = scmp.eq.s32.totalorder %s30, 1
      %p393 = por %p391, %p392
      %p395 = scmp.ne.s32.totalorder %s378, %s394
      %p396 = scmp.eq.s32.totalorder %s30, 0
      %p397 = por %p395, %p396
      %p398 = scmp.le.s32.totalorder 1, %s24
      %p399 = scmp.lt.s32.totalorder %s24, 3
      %p400 = pnand %p398, %p399
      %p401 = pneg %p400
      // Predicated region
      $region9: #{spp_block.1} parent=5 // pred_check
        _
      $region10: #{spp_block.1} parent=5 // pred_check_branch
        %403 = sbr.rel (%p400) target = $region12
      $region11: #{spp_block.1} parent=5 // pred_region
        %s404 = ssub.s32 %s24, 1
        // Predicated region
        $region13: #{spp_block.1} parent=11 // pred_check
          %p405 = pneg %p175
        $region14: #{spp_block.1} parent=11 // pred_check_branch
          %407 = sbr.rel (%p405) target = $region16
        $region15: #{spp_block.1} parent=11 // pred_region
          _
        $region16: #{spp_block.1} parent=11 // pred_fallthru
          _
        // Predicated region
        $region17: #{spp_block.1} parent=11 // pred_check
          %p408 = pneg %p196
        $region18: #{spp_block.1} parent=11 // pred_check_branch
          %410 = sbr.rel (%p408) target = $region20
        $region19: #{spp_block.1} parent=11 // pred_region
          _
        $region20: #{spp_block.1} parent=11 // pred_fallthru
          _
        // Predicated region
        $region21: #{spp_block.1} parent=11 // pred_check
          %p411 = pneg %p217
        $region22: #{spp_block.1} parent=11 // pred_check_branch
          %413 = sbr.rel (%p411) target = $region24
        $region23: #{spp_block.1} parent=11 // pred_region
          _
        $region24: #{spp_block.1} parent=11 // pred_fallthru
          _
        // Predicated region
        $region25: #{spp_block.1} parent=11 // pred_check
          %p414 = pneg %p238
        $region26: #{spp_block.1} parent=11 // pred_check_branch
          %416 = sbr.rel (%p414) target = $region28
        $region27: #{spp_block.1} parent=11 // pred_region
          _
        $region28: #{spp_block.1} parent=11 // pred_fallthru
          _
        // Predicated region
        $region29: #{spp_block.1} parent=11 // pred_check
          %p417 = pneg %p259
        $region30: #{spp_block.1} parent=11 // pred_check_branch
          %419 = sbr.rel (%p417) target = $region32
        $region31: #{spp_block.1} parent=11 // pred_region
          _
        $region32: #{spp_block.1} parent=11 // pred_fallthru
          _
        // Predicated region
        $region33: #{spp_block.1} parent=11 // pred_check
          %p420 = pneg %p280
        $region34: #{spp_block.1} parent=11 // pred_check_branch
          %422 = sbr.rel (%p420) target = $region36
        $region35: #{spp_block.1} parent=11 // pred_region
          _
        $region36: #{spp_block.1} parent=11 // pred_fallthru
          _
        // Predicated region
        $region37: #{spp_block.1} parent=11 // pred_check
          %p423 = pneg %p301
        $region38: #{spp_block.1} parent=11 // pred_check_branch
          %425 = sbr.rel (%p423) target = $region40
        $region39: #{spp_block.1} parent=11 // pred_region
          _
        $region40: #{spp_block.1} parent=11 // pred_fallthru
          _
        // Predicated region
        $region41: #{spp_block.1} parent=11 // pred_check
          %p426 = pneg %p322
        $region42: #{spp_block.1} parent=11 // pred_check_branch
          %428 = sbr.rel (%p426) target = $region44
        $region43: #{spp_block.1} parent=11 // pred_region
          _
        $region44: #{spp_block.1} parent=11 // pred_fallthru
          _
        // Predicated region
        $region45: #{spp_block.1} parent=11 // pred_check
          %p429 = pneg %p343
        $region46: #{spp_block.1} parent=11 // pred_check_branch
          %431 = sbr.rel (%p429) target = $region48
        $region47: #{spp_block.1} parent=11 // pred_region
          _
        $region48: #{spp_block.1} parent=11 // pred_fallthru
          _
        // Predicated region
        $region49: #{spp_block.1} parent=11 // pred_check
          %p432 = pneg %p364
        $region50: #{spp_block.1} parent=11 // pred_check_branch
          %434 = sbr.rel (%p432) target = $region52
        $region51: #{spp_block.1} parent=11 // pred_region
          _
        $region52: #{spp_block.1} parent=11 // pred_fallthru
          _
      $region12: #{spp_block.1} parent=5 // pred_fallthru
        _
      %p435 = scmp.lt.s32.totalorder %s24, 2
      // Predicated region
      $region53: #{spp_block.1} parent=5 // pred_check
        %p436 = pneg %p435
      $region54: #{spp_block.1} parent=5 // pred_check_branch
        %438 = sbr.rel (%p436) target = $region56
      $region55: #{spp_block.1} parent=5 // pred_region
        // Predicated region
        $region57: #{spp_block.1} parent=55 // pred_check
          %p439 = pneg %p44
        $region58: #{spp_block.1} parent=55 // pred_check_branch
          %441 = sbr.rel (%p439) target = $region60
        $region59: #{spp_block.1} parent=55 // pred_region
          %p442 = scmp.lt.s32.totalorder %s24, 1
          %s443 = scalar_select %p442, %s24, 1
          %s444 = smul.addr %s443, 12
          %s445 = smul.addr %s444, 8
          %s446 = scalar_lea.vmem %s0, %s445
        $region60: #{spp_block.1} parent=55 // pred_fallthru
          _
        // Predicated region
        $region61: #{spp_block.1} parent=55 // pred_check
          %p447 = pneg %p70
        $region62: #{spp_block.1} parent=55 // pred_check_branch
          %449 = sbr.rel (%p447) target = $region64
        $region63: #{spp_block.1} parent=55 // pred_region
          %p450 = scmp.lt.s32.totalorder %s24, 1
          %s451 = scalar_select %p450, %s24, 1
          %s452 = smul.addr %s451, 2
          %s453 = smul.addr %s452, 4
          %s454 = scalar_lea.vmem %s1, %s453
        $region64: #{spp_block.1} parent=55 // pred_fallthru
          _
        // Predicated region
        $region65: #{spp_block.1} parent=55 // pred_check
          %p455 = pneg %p96
        $region66: #{spp_block.1} parent=55 // pred_check_branch
          %457 = sbr.rel (%p455) target = $region68
        $region67: #{spp_block.1} parent=55 // pred_region
          %p458 = scmp.lt.s32.totalorder %s24, 1
          %s459 = scalar_select %p458, %s24, 1
          %s460 = smul.addr %s459, 4
          %s461 = scalar_lea.vmem %s2, %s460
        $region68: #{spp_block.1} parent=55 // pred_fallthru
          _
        // Predicated region
        $region69: #{spp_block.1} parent=55 // pred_check
          %p462 = pneg %p122
        $region70: #{spp_block.1} parent=55 // pred_check_branch
          %464 = sbr.rel (%p462) target = $region72
        $region71: #{spp_block.1} parent=55 // pred_region
          %p465 = scmp.lt.s32.totalorder %s24, 1
          %s466 = scalar_select %p465, %s24, 1
          %s467 = smul.addr %s466, 4
          %s468 = scalar_lea.vmem %s3, %s467
        $region72: #{spp_block.1} parent=55 // pred_fallthru
          _
        // Predicated region
        $region73: #{spp_block.1} parent=55 // pred_check
          %p469 = pneg %p148
        $region74: #{spp_block.1} parent=55 // pred_check_branch
          %471 = sbr.rel (%p469) target = $region76
        $region75: #{spp_block.1} parent=55 // pred_region
          %p472 = scmp.lt.s32.totalorder %s24, 1
          %s473 = scalar_select %p472, %s24, 1
          %s474 = smul.addr %s473, 4
          %s475 = scalar_lea.vmem %s4, %s474
        $region76: #{spp_block.1} parent=55 // pred_fallthru
          _
      $region56: #{spp_block.1} parent=5 // pred_fallthru
        _
      %p476 = scmp.le.s32.totalorder 1, %s24
      %p477 = scmp.lt.s32.totalorder %s24, 3
      %p478 = pnand %p476, %p477
      %p479 = pneg %p478
      // Predicated region
      $region77: #{spp_block.1} parent=5 // pred_check
        _
      $region78: #{spp_block.1} parent=5 // pred_check_branch
        %481 = sbr.rel (%p478) target = $region80
      $region79: #{spp_block.1} parent=5 // pred_region
        %s482 = ssub.s32 %s24, 1
        %p483 = scmp.lt.s32.totalorder %s29, 1
        %s484 = scalar_select %p483, %s29, 1
        %s485 = smul.addr %s484, 12
        %s486 = smul.addr %s485, 8
        %s487 = scalar_lea.vmem %s0, %s486
        %p488 = pneg %p50
        %p489 = pneg %p47
        %p490 = scmp.lt.s32.totalorder %s29, 1
        %s491 = scalar_select %p490, %s29, 1
        %s492 = smul.addr %s491, 2
        %s493 = smul.addr %s492, 4
        %s494 = scalar_lea.vmem %s1, %s493
        %p495 = pneg %p76
        %p496 = pneg %p73
        %p497 = scmp.lt.s32.totalorder %s29, 1
        %s498 = scalar_select %p497, %s29, 1
        %s499 = smul.addr %s498, 4
        %s500 = scalar_lea.vmem %s2, %s499
        %p501 = pneg %p102
        %p502 = pneg %p99
        %p503 = scmp.lt.s32.totalorder %s29, 1
        %s504 = scalar_select %p503, %s29, 1
        %s505 = smul.addr %s504, 4
        %s506 = scalar_lea.vmem %s3, %s505
        %p507 = pneg %p128
        %p508 = pneg %p125
        %p509 = scmp.lt.s32.totalorder %s29, 1
        %s510 = scalar_select %p509, %s29, 1
        %s511 = smul.addr %s510, 4
        %s512 = scalar_lea.vmem %s4, %s511
        %p513 = pneg %p154
        %p514 = pneg %p151
        %p515 = pneg %p175
        %p516 = pneg %p172
        %p517 = pneg %p196
        %p518 = pneg %p193
        %p519 = pneg %p217
        %p520 = pneg %p214
        %p521 = pneg %p238
        %p522 = pneg %p235
        %p523 = pneg %p259
        %p524 = pneg %p256
        %p525 = pneg %p280
        %p526 = pneg %p277
        %p527 = pneg %p301
        %p528 = pneg %p298
        %p529 = pneg %p322
        %p530 = pneg %p319
        %p531 = pneg %p343
        %p532 = pneg %p340
        %p533 = pneg %p364
        %p534 = pneg %p361
        %p535 = pneg %p390
        %p536 = pneg %p387
        %s537 = sand.u32 %s377, 1
        %s538 = scalar_lea.sflag [#allocation4], %s537
        %s539 = sand.u32 %s377, 1
        %s540 = smul.addr %s539, 192
        %s541 = scalar_lea.vmem [#allocation3], %s540
        %p542 = scmp.lt.s32.totalorder %s29, 1
        %s543 = scalar_select %p542, %s29, 1
        %s544 = smul.addr %s543, 12
        %s545 = smul.addr %s544, 8
        %s546 = scalar_lea.vmem %s0, %s545
        %p547 = scmp.lt.s32.totalorder %s29, 1
        %s548 = scalar_select %p547, %s29, 1
        %s549 = smul.addr %s548, 2
        %s550 = smul.addr %s549, 4
        %s551 = scalar_lea.vmem %s1, %s550
        %p552 = scmp.lt.s32.totalorder %s29, 1
        %s553 = scalar_select %p552, %s29, 1
        %s554 = smul.addr %s553, 4
        %s555 = scalar_lea.vmem %s2, %s554
        %p556 = scmp.lt.s32.totalorder %s29, 1
        %s557 = scalar_select %p556, %s29, 1
        %s558 = smul.addr %s557, 4
        %s559 = scalar_lea.vmem %s3, %s558
        %p560 = scmp.lt.s32.totalorder %s29, 1
        %s561 = scalar_select %p560, %s29, 1
        %s562 = smul.addr %s561, 4
        %s563 = scalar_lea.vmem %s4, %s562
        %v564 = vld [vmem:[%s551] sm:$0xff]
        %v565 = vld [vmem:[%s7] sm:$0xff]
        %v566 = vld [vmem:[%s7 + $0x8] sm:$0xff]
        %v567 = vld [vmem:[%s7 + $0x10] sm:$0xff]
        %v568 = vld [vmem:[%s8] sm:$0xff]
        %v569 = vld [vmem:[%s8 + $0x8] sm:$0xf]
        %v570 = vld [vmem:[%s5] sm:$0x1]
        %v571 = vld [vmem:[%s6] sm:$0x1]
        %573 = vset.pattern.permute.xlu0 0
        %574 = vperm.xlu0 %573, %v571
        %v575 = vpop.permute.xlu0 %574
        %v577 = vlaneseq
        %v578 = vshrl.u32 %v577, 7
        %v579 = vsub.s32 0, %v578
        %v580 = vrot.slane %v575, %v579
        %v582 = vcombine.high %v564, %v564
        %vm583 = vcmask 31744
        %v585 = vsel %vm583, %v570, 0
        %vm587 = vcmask 1043456
        %v588 = vsel %vm587, %v564, 0
        %v590 = vsel %vm587, %v582, 0
        %592 = vmatprep.subr.mxu0 %v590
        %593 = vmatpush1.msra.mxu0 %v588
        %594 = vmatprep.subr.mxu0 0.0
        %595 = vmatpush1.msra.mxu0 0.0
        %596 = vmatprep.subr.mxu0 0.0
        %597 = vmatpush1.msra.mxu0 0.0
        %598 = vmatprep.subr.mxu0 0.0
        %599 = vmatpush1.msra.mxu0 0.0
        %600 = vmatprep.subr.mxu0 0.0
        %601 = vmatpush1.msra.mxu0 0.0
        %602 = vmatprep.subr.mxu0 0.0
        %603 = vmatpush1.msra.mxu0 0.0
        %604 = vmatprep.subr.mxu0 0.0
        %605 = vmatpush1.msra.mxu0 0.0
        %606 = vmatprep.subr.mxu0 0.0
        %607 = vmatpush1.msra.mxu0 0.0
        %608 = vmatprep.subr.mxu0 0.0
        %609 = vmatpush1.msra.mxu0 0.0
        %610 = vmatprep.subr.mxu0 0.0
        %611 = vmatpush1.msra.mxu0 0.0
        %612 = vmatprep.subr.mxu0 0.0
        %613 = vmatpush1.msra.mxu0 0.0
        %614 = vmatprep.subr.mxu0 0.0
        %615 = vmatpush1.msra.mxu0 0.0
        %616 = vmatprep.subr.mxu0 0.0
        %617 = vmatpush1.msra.mxu0 0.0
        %618 = vmatprep.subr.mxu0 0.0
        %619 = vmatpush1.msra.mxu0 0.0
        %620 = vmatprep.subr.mxu0 0.0
        %621 = vmatpush1.msra.mxu0 0.0
        %622 = vmatprep.subr.mxu0 0.0
        %623 = vmatpush1.msra.mxu0 0.0
        %624 = vmatprep.subr.mxu0 0.0
        %625 = vmatpush1.msra.mxu0 0.0
        %626 = vmatprep.subr.mxu0 0.0
        %627 = vmatpush1.msra.mxu0 0.0
        %628 = vmatprep.subr.mxu0 0.0
        %629 = vmatpush1.msra.mxu0 0.0
        %630 = vmatprep.subr.mxu0 0.0
        %631 = vmatpush1.msra.mxu0 0.0
        %632 = vmatprep.subr.mxu0 0.0
        %633 = vmatpush1.msra.mxu0 0.0
        %634 = vmatprep.subr.mxu0 0.0
        %635 = vmatpush1.msra.mxu0 0.0
        %636 = vmatprep.subr.mxu0 0.0
        %637 = vmatpush1.msra.mxu0 0.0
        %638 = vmatprep.subr.mxu0 0.0
        %639 = vmatpush1.msra.mxu0 0.0
        %640 = vmatprep.subr.mxu0 0.0
        %641 = vmatpush1.msra.mxu0 0.0
        %642 = vmatprep.subr.mxu0 0.0
        %643 = vmatpush1.msra.mxu0 0.0
        %644 = vmatprep.subr.mxu0 0.0
        %645 = vmatpush1.msra.mxu0 0.0
        %646 = vmatprep.subr.mxu0 0.0
        %647 = vmatpush1.msra.mxu0 0.0
        %648 = vmatprep.subr.mxu0 0.0
        %649 = vmatpush1.msra.mxu0 0.0
        %650 = vmatprep.subr.mxu0 0.0
        %651 = vmatpush1.msra.mxu0 0.0
        %652 = vmatprep.subr.mxu0 0.0
        %653 = vmatpush1.msra.mxu0 0.0
        %654 = vmatprep.subr.mxu0 0.0
        %655 = vmatpush1.msra.mxu0 0.0
        %656 = vmatprep.mubr.f32.mxu0 0.0
        %657 = vmatmul.mubr.f32.gmra.mrb[0].mxu0 %v585
        %v658 = vpop.f32.mrb[0].mxu0
        %v659 = vadd.f32 %v580, %v658
        %v660 = vpop.f32.mrb[0].mxu0
        %v661 = vadd.f32 %v580, %v660
        %662 = vdwg.mxu0
        %vm663 = vcmask 90112
        %664 = vst.msk [vmem:[#allocation2] sm:$0x1] %vm663, %v659
        %666 = vrot.lane.b32.xlu0 %v659, 116
        %v667 = vpop.permute.xlu0 %666
        %669 = vst.msk [vmem:[#allocation2 + $0x1] sm:$0x1] %vm663, %v667
        %670 = vrot.lane.b32.xlu0 %v659, 104
        %v671 = vpop.permute.xlu0 %670
        %673 = vst.msk [vmem:[#allocation2 + $0x2] sm:$0x1] %vm663, %v671
        %674 = vrot.lane.b32.xlu0 %v659, 92
        %v675 = vpop.permute.xlu0 %674
        %677 = vst.msk [vmem:[#allocation2 + $0x3] sm:$0x1] %vm663, %v675
        %678 = vrot.lane.b32.xlu0 %v659, 80
        %v679 = vpop.permute.xlu0 %678
        %681 = vst.msk [vmem:[#allocation2 + $0x4] sm:$0x1] %vm663, %v679
        %682 = vrot.lane.b32.xlu0 %v659, 68
        %v683 = vpop.permute.xlu0 %682
        %685 = vst.msk [vmem:[#allocation2 + $0x5] sm:$0x1] %vm663, %v683
        %686 = vrot.lane.b32.xlu0 %v659, 56
        %v687 = vpop.permute.xlu0 %686
        %689 = vst.msk [vmem:[#allocation2 + $0x6] sm:$0x1] %vm663, %v687
        %690 = vrot.lane.b32.xlu0 %v659, 44
        %v691 = vpop.permute.xlu0 %690
        %693 = vst.msk [vmem:[#allocation2 + $0x7] sm:$0x1] %vm663, %v691
        %694 = vrot.lane.b32.xlu0 %v659, 32
        %v695 = vpop.permute.xlu0 %694
        %697 = vst.msk [vmem:[#allocation2 + $0x8] sm:$0x1] %vm663, %v695
        %698 = vrot.lane.b32.xlu0 %v659, 20
        %v699 = vpop.permute.xlu0 %698
        %701 = vst.msk [vmem:[#allocation2 + $0x9] sm:$0x1] %vm663, %v699
        %703 = vrot.lane.b32.xlu0 %v659, 8
        %v704 = vpop.permute.xlu0 %703
        %705 = vrot.lane.b32.xlu0 %v661, 8
        %v706 = vpop.permute.xlu0 %705
        %vm707 = vcmask 64512
        %v708 = vsel %vm707, %v704, %v706
        %710 = vst.msk [vmem:[#allocation2 + $0xa] sm:$0x1] %vm663, %v708
        %711 = vrot.lane.b32.xlu0 %v661, 124
        %v712 = vpop.permute.xlu0 %711
        %714 = vst.msk [vmem:[#allocation2 + $0xb] sm:$0x1] %vm663, %v712
        %v715 = vld [vmem:[#allocation2] sm:$0xff]
        %v716 = vld [vmem:[#allocation2 + $0x8] sm:$0xf]
        %vm717 = vcmask 97280
        %v719 = vsel %vm717, %v565, 0
        %v722 = vsel %vm717, %v566, 0
        %v725 = vsel %vm717, %v567, 0
        %v728 = vsel %vm587, %v716, 0
        %730 = vmatprep.subr.mxu0 0.0
        %731 = vmatpush1.msra.mxu0 %v715
        %732 = vmatprep.subr.mxu0 0.0
        %733 = vmatpush1.msra.mxu0 %v728
        %734 = vmatprep.subr.mxu0 0.0
        %735 = vmatpush1.msra.mxu0 0.0
        %736 = vmatprep.subr.mxu0 0.0
        %737 = vmatpush1.msra.mxu0 0.0
        %738 = vmatprep.subr.mxu0 0.0
        %739 = vmatpush1.msra.mxu0 0.0
        %740 = vmatprep.subr.mxu0 0.0
        %741 = vmatpush1.msra.mxu0 0.0
        %742 = vmatprep.subr.mxu0 0.0
        %743 = vmatpush1.msra.mxu0 0.0
        %744 = vmatprep.subr.mxu0 0.0
        %745 = vmatpush1.msra.mxu0 0.0
        %746 = vmatprep.subr.mxu0 0.0
        %747 = vmatpush1.msra.mxu0 0.0
        %748 = vmatprep.subr.mxu0 0.0
        %749 = vmatpush1.msra.mxu0 0.0
        %750 = vmatprep.subr.mxu0 0.0
        %751 = vmatpush1.msra.mxu0 0.0
        %752 = vmatprep.subr.mxu0 0.0
        %753 = vmatpush1.msra.mxu0 0.0
        %754 = vmatprep.subr.mxu0 0.0
        %755 = vmatpush1.msra.mxu0 0.0
        %756 = vmatprep.subr.mxu0 0.0
        %757 = vmatpush1.msra.mxu0 0.0
        %758 = vmatprep.subr.mxu0 0.0
        %759 = vmatpush1.msra.mxu0 0.0
        %760 = vmatprep.subr.mxu0 0.0
        %761 = vmatpush1.msra.mxu0 0.0
        %762 = vmatprep.subr.mxu0 0.0
        %763 = vmatpush1.msra.mxu0 0.0
        %764 = vmatprep.subr.mxu0 0.0
        %765 = vmatpush1.msra.mxu0 0.0
        %766 = vmatprep.subr.mxu0 0.0
        %767 = vmatpush1.msra.mxu0 0.0
        %768 = vmatprep.subr.mxu0 0.0
        %769 = vmatpush1.msra.mxu0 0.0
        %770 = vmatprep.subr.mxu0 0.0
        %771 = vmatpush1.msra.mxu0 0.0
        %772 = vmatprep.subr.mxu0 0.0
        %773 = vmatpush1.msra.mxu0 0.0
        %774 = vmatprep.subr.mxu0 0.0
        %775 = vmatpush1.msra.mxu0 0.0
        %776 = vmatprep.subr.mxu0 0.0
        %777 = vmatpush1.msra.mxu0 0.0
        %778 = vmatprep.subr.mxu0 0.0
        %779 = vmatpush1.msra.mxu0 0.0
        %780 = vmatprep.subr.mxu0 0.0
        %781 = vmatpush1.msra.mxu0 0.0
        %782 = vmatprep.subr.mxu0 0.0
        %783 = vmatpush1.msra.mxu0 0.0
        %784 = vmatprep.subr.mxu0 0.0
        %785 = vmatpush1.msra.mxu0 0.0
        %786 = vmatprep.subr.mxu0 0.0
        %787 = vmatpush1.msra.mxu0 0.0
        %788 = vmatprep.subr.mxu0 0.0
        %789 = vmatpush1.msra.mxu0 0.0
        %790 = vmatprep.subr.mxu0 0.0
        %791 = vmatpush1.msra.mxu0 0.0
        %792 = vmatprep.subr.mxu0 0.0
        %793 = vmatpush1.msra.mxu0 0.0
        %794 = vmatprep.mubr.f32.mxu0 0.0
        %795 = vmatmul.mubr.f32.gmra.mrb[0].mxu0 %v719
        %v796 = vpop.f32.mrb[0].mxu0
        %v797 = vadd.f32 0.0, %v796
        %v798 = vpop.f32.mrb[0].mxu0
        %799 = vmatprep.mubr.f32.mxu0 0.0
        %800 = vmatmul.mubr.f32.gmra.mrb[0].mxu0 %v722
        %v801 = vpop.f32.mrb[0].mxu0
        %v802 = vadd.f32 0.0, %v801
        %v803 = vpop.f32.mrb[0].mxu0
        %804 = vmatprep.mubr.f32.mxu0 0.0
        %805 = vmatmul.mubr.f32.gmra.mrb[0].mxu0 %v725
        %v806 = vpop.f32.mrb[0].mxu0
        %v807 = vadd.f32 0.0, %v806
        %v808 = vpop.f32.mrb[0].mxu0
        %809 = vdwg.mxu0
        %v811 = vsel %vm717, %v797, 0
        %v814 = vsel %vm717, %v802, 0
        %v817 = vsel %vm717, %v807, 0
        %v820 = vsel %vm587, %v569, 0
        %822 = vmatprep.subr.mxu0 0.0
        %823 = vmatpush1.msra.mxu0 %v568
        %824 = vmatprep.subr.mxu0 0.0
        %825 = vmatpush1.msra.mxu0 %v820
        %826 = vmatprep.subr.mxu0 0.0
        %827 = vmatpush1.msra.mxu0 0.0
        %828 = vmatprep.subr.mxu0 0.0
        %829 = vmatpush1.msra.mxu0 0.0
        %830 = vmatprep.subr.mxu0 0.0
        %831 = vmatpush1.msra.mxu0 0.0
        %832 = vmatprep.subr.mxu0 0.0
        %833 = vmatpush1.msra.mxu0 0.0
        %834 = vmatprep.subr.mxu0 0.0
        %835 = vmatpush1.msra.mxu0 0.0
        %836 = vmatprep.subr.mxu0 0.0
        %837 = vmatpush1.msra.mxu0 0.0
        %838 = vmatprep.subr.mxu0 0.0
        %839 = vmatpush1.msra.mxu0 0.0
        %840 = vmatprep.subr.mxu0 0.0
        %841 = vmatpush1.msra.mxu0 0.0
        %842 = vmatprep.subr.mxu0 0.0
        %843 = vmatpush1.msra.mxu0 0.0
        %844 = vmatprep.subr.mxu0 0.0
        %845 = vmatpush1.msra.mxu0 0.0
        %846 = vmatprep.subr.mxu0 0.0
        %847 = vmatpush1.msra.mxu0 0.0
        %848 = vmatprep.subr.mxu0 0.0
        %849 = vmatpush1.msra.mxu0 0.0
        %850 = vmatprep.subr.mxu0 0.0
        %851 = vmatpush1.msra.mxu0 0.0
        %852 = vmatprep.subr.mxu0 0.0
        %853 = vmatpush1.msra.mxu0 0.0
        %854 = vmatprep.subr.mxu0 0.0
        %855 = vmatpush1.msra.mxu0 0.0
        %856 = vmatprep.subr.mxu0 0.0
        %857 = vmatpush1.msra.mxu0 0.0
        %858 = vmatprep.subr.mxu0 0.0
        %859 = vmatpush1.msra.mxu0 0.0
        %860 = vmatprep.subr.mxu0 0.0
        %861 = vmatpush1.msra.mxu0 0.0
        %862 = vmatprep.subr.mxu0 0.0
        %863 = vmatpush1.msra.mxu0 0.0
        %864 = vmatprep.subr.mxu0 0.0
        %865 = vmatpush1.msra.mxu0 0.0
        %866 = vmatprep.subr.mxu0 0.0
        %867 = vmatpush1.msra.mxu0 0.0
        %868 = vmatprep.subr.mxu0 0.0
        %869 = vmatpush1.msra.mxu0 0.0
        %870 = vmatprep.subr.mxu0 0.0
        %871 = vmatpush1.msra.mxu0 0.0
        %872 = vmatprep.subr.mxu0 0.0
        %873 = vmatpush1.msra.mxu0 0.0
        %874 = vmatprep.subr.mxu0 0.0
        %875 = vmatpush1.msra.mxu0 0.0
        %876 = vmatprep.subr.mxu0 0.0
        %877 = vmatpush1.msra.mxu0 0.0
        %878 = vmatprep.subr.mxu0 0.0
        %879 = vmatpush1.msra.mxu0 0.0
        %880 = vmatprep.subr.mxu0 0.0
        %881 = vmatpush1.msra.mxu0 0.0
        %882 = vmatprep.subr.mxu0 0.0
        %883 = vmatpush1.msra.mxu0 0.0
        %884 = vmatprep.subr.mxu0 0.0
        %885 = vmatpush1.msra.mxu0 0.0
        %886 = vmatprep.mubr.f32.mxu0 0.0
        %887 = vmatmul.mubr.f32.gmra.mrb[0].mxu0 %v811
        %v888 = vpop.f32.mrb[0].mxu0
        %v889 = vadd.f32 0.0, %v888
        %v890 = vpop.f32.mrb[0].mxu0
        %891 = vmatprep.mubr.f32.mxu0 0.0
        %892 = vmatmul.mubr.f32.gmra.mrb[0].mxu0 %v814
        %v893 = vpop.f32.mrb[0].mxu0
        %v894 = vadd.f32 0.0, %v893
        %v895 = vpop.f32.mrb[0].mxu0
        %896 = vmatprep.mubr.f32.mxu0 0.0
        %897 = vmatmul.mubr.f32.gmra.mrb[0].mxu0 %v817
        %v898 = vpop.f32.mrb[0].mxu0
        %v899 = vadd.f32 0.0, %v898
        %v900 = vpop.f32.mrb[0].mxu0
        %901 = vdwg.mxu0
        %vm902 = vcmask 195584
        %903 = vst.msk [vmem:[%s541] sm:$0xff] %vm902, %v889
        %904 = vst.msk [vmem:[%s541 + $0x8] sm:$0xff] %vm902, %v894
        %905 = vst.msk [vmem:[%s541 + $0x10] sm:$0xff] %vm902, %v899
        %v906 = vld [vmem:[%s555] sm:$0xf]
        %v907 = vld [vmem:[%s9] sm:$0xff]
        %v908 = vld [vmem:[%s9 + $0x8] sm:$0xff]
        %v909 = vld [vmem:[%s9 + $0x10] sm:$0xff]
        %v910 = vld [vmem:[%s10] sm:$0x3f]
        %s911 = scalar_lea.vmem %s5, 1
        %v912 = vld [vmem:[%s911] sm:$0x1]
        %s913 = scalar_lea.vmem %s6, 1
        %v914 = vld [vmem:[%s913] sm:$0x1]
        %916 = vset.pattern.permute.xlu0 0
        %917 = vperm.xlu0 %916, %v914
        %v918 = vpop.permute.xlu0 %917
        %v920 = vlaneseq
        %v921 = vshrl.u32 %v920, 7
        %v922 = vsub.s32 0, %v921
        %v923 = vrot.slane %v918, %v922
        %v925 = vsel %vm583, %v912, 0
        %v928 = vsel %vm587, %v906, 0
        %930 = vmatprep.subr.mxu0 0.0
        %931 = vmatpush1.msra.mxu0 %v928
        %932 = vmatprep.subr.mxu0 0.0
        %933 = vmatpush1.msra.mxu0 0.0
        %934 = vmatprep.subr.mxu0 0.0
        %935 = vmatpush1.msra.mxu0 0.0
        %936 = vmatprep.subr.mxu0 0.0
        %937 = vmatpush1.msra.mxu0 0.0
        %938 = vmatprep.subr.mxu0 0.0
        %939 = vmatpush1.msra.mxu0 0.0
        %940 = vmatprep.subr.mxu0 0.0
        %941 = vmatpush1.msra.mxu0 0.0
        %942 = vmatprep.subr.mxu0 0.0
        %943 = vmatpush1.msra.mxu0 0.0
        %944 = vmatprep.subr.mxu0 0.0
        %945 = vmatpush1.msra.mxu0 0.0
        %946 = vmatprep.subr.mxu0 0.0
        %947 = vmatpush1.msra.mxu0 0.0
        %948 = vmatprep.subr.mxu0 0.0
        %949 = vmatpush1.msra.mxu0 0.0
        %950 = vmatprep.subr.mxu0 0.0
        %951 = vmatpush1.msra.mxu0 0.0
        %952 = vmatprep.subr.mxu0 0.0
        %953 = vmatpush1.msra.mxu0 0.0
        %954 = vmatprep.subr.mxu0 0.0
        %955 = vmatpush1.msra.mxu0 0.0
        %956 = vmatprep.subr.mxu0 0.0
        %957 = vmatpush1.msra.mxu0 0.0
        %958 = vmatprep.subr.mxu0 0.0
        %959 = vmatpush1.msra.mxu0 0.0
        %960 = vmatprep.subr.mxu0 0.0
        %961 = vmatpush1.msra.mxu0 0.0
        %962 = vmatprep.subr.mxu0 0.0
        %963 = vmatpush1.msra.mxu0 0.0
        %964 = vmatprep.subr.mxu0 0.0
        %965 = vmatpush1.msra.mxu0 0.0
        %966 = vmatprep.subr.mxu0 0.0
        %967 = vmatpush1.msra.mxu0 0.0
        %968 = vmatprep.subr.mxu0 0.0
        %969 = vmatpush1.msra.mxu0 0.0
        %970 = vmatprep.subr.mxu0 0.0
        %971 = vmatpush1.msra.mxu0 0.0
        %972 = vmatprep.subr.mxu0 0.0
        %973 = vmatpush1.msra.mxu0 0.0
        %974 = vmatprep.subr.mxu0 0.0
        %975 = vmatpush1.msra.mxu0 0.0
        %976 = vmatprep.subr.mxu0 0.0
        %977 = vmatpush1.msra.mxu0 0.0
        %978 = vmatprep.subr.mxu0 0.0
        %979 = vmatpush1.msra.mxu0 0.0
        %980 = vmatprep.subr.mxu0 0.0
        %981 = vmatpush1.msra.mxu0 0.0
        %982 = vmatprep.subr.mxu0 0.0
        %983 = vmatpush1.msra.mxu0 0.0
        %984 = vmatprep.subr.mxu0 0.0
        %985 = vmatpush1.msra.mxu0 0.0
        %986 = vmatprep.subr.mxu0 0.0
        %987 = vmatpush1.msra.mxu0 0.0
        %988 = vmatprep.subr.mxu0 0.0
        %989 = vmatpush1.msra.mxu0 0.0
        %990 = vmatprep.subr.mxu0 0.0
        %991 = vmatpush1.msra.mxu0 0.0
        %992 = vmatprep.subr.mxu0 0.0
        %993 = vmatpush1.msra.mxu0 0.0
        %994 = vmatprep.mubr.f32.mxu0 0.0
        %995 = vmatmul.mubr.f32.gmra.mrb[0].mxu0 %v925
        %v996 = vpop.f32.mrb[0].mxu0
        %v997 = vadd.f32 %v923, %v996
        %v998 = vpop.f32.mrb[0].mxu0
        %999 = vdwg.mxu0
        %vm1000 = vcmask 40960
        %1001 = vst.msk [vmem:[#allocation2] sm:$0x1] %vm1000, %v997
        %1003 = vrot.lane.b32.xlu0 %v997, 122
        %v1004 = vpop.permute.xlu0 %1003
        %1006 = vst.msk [vmem:[#allocation2 + $0x1] sm:$0x1] %vm1000, %v1004
        %1007 = vrot.lane.b32.xlu0 %v997, 116
        %v1008 = vpop.permute.xlu0 %1007
        %1010 = vst.msk [vmem:[#allocation2 + $0x2] sm:$0x1] %vm1000, %v1008
        %1011 = vrot.lane.b32.xlu0 %v997, 110
        %v1012 = vpop.permute.xlu0 %1011
        %1014 = vst.msk [vmem:[#allocation2 + $0x3] sm:$0x1] %vm1000, %v1012
        %1015 = vrot.lane.b32.xlu0 %v997, 104
        %v1016 = vpop.permute.xlu0 %1015
        %1018 = vst.msk [vmem:[#allocation2 + $0x4] sm:$0x1] %vm1000, %v1016
        %1019 = vrot.lane.b32.xlu0 %v997, 98
        %v1020 = vpop.permute.xlu0 %1019
        %1022 = vst.msk [vmem:[#allocation2 + $0x5] sm:$0x1] %vm1000, %v1020
        %v1023 = vld [vmem:[#allocation2] sm:$0x3f]
        %vm1024 = vcmask 48128
        %v1026 = vsel %vm1024, %v907, 0
        %v1029 = vsel %vm1024, %v908, 0
        %v1032 = vsel %vm1024, %v909, 0
        %vm1034 = vcmask 1045504
        %v1036 = vsel %vm1034, %v1023, 0
        %1038 = vmatprep.subr.mxu0 0.0
        %1039 = vmatpush1.msra.mxu0 %v1036
        %1040 = vmatprep.subr.mxu0 0.0
        %1041 = vmatpush1.msra.mxu0 0.0
        %1042 = vmatprep.subr.mxu0 0.0
        %1043 = vmatpush1.msra.mxu0 0.0
        %1044 = vmatprep.subr.mxu0 0.0
        %1045 = vmatpush1.msra.mxu0 0.0
        %1046 = vmatprep.subr.mxu0 0.0
        %1047 = vmatpush1.msra.mxu0 0.0
        %1048 = vmatprep.subr.mxu0 0.0
        %1049 = vmatpush1.msra.mxu0 0.0
        %1050 = vmatprep.subr.mxu0 0.0
        %1051 = vmatpush1.msra.mxu0 0.0
        %1052 = vmatprep.subr.mxu0 0.0
        %1053 = vmatpush1.msra.mxu0 0.0
        %1054 = vmatprep.subr.mxu0 0.0
        %1055 = vmatpush1.msra.mxu0 0.0
        %1056 = vmatprep.subr.mxu0 0.0
        %1057 = vmatpush1.msra.mxu0 0.0
        %1058 = vmatprep.subr.mxu0 0.0
        %1059 = vmatpush1.msra.mxu0 0.0
        %1060 = vmatprep.subr.mxu0 0.0
        %1061 = vmatpush1.msra.mxu0 0.0
        %1062 = vmatprep.subr.mxu0 0.0
        %1063 = vmatpush1.msra.mxu0 0.0
        %1064 = vmatprep.subr.mxu0 0.0
        %1065 = vmatpush1.msra.mxu0 0.0
        %1066 = vmatprep.subr.mxu0 0.0
        %1067 = vmatpush1.msra.mxu0 0.0
        %1068 = vmatprep.subr.mxu0 0.0
        %1069 = vmatpush1.msra.mxu0 0.0
        %1070 = vmatprep.subr.mxu0 0.0
        %1071 = vmatpush1.msra.mxu0 0.0
        %1072 = vmatprep.subr.mxu0 0.0
        %1073 = vmatpush1.msra.mxu0 0.0
        %1074 = vmatprep.subr.mxu0 0.0
        %1075 = vmatpush1.msra.mxu0 0.0
        %1076 = vmatprep.subr.mxu0 0.0
        %1077 = vmatpush1.msra.mxu0 0.0
        %1078 = vmatprep.subr.mxu0 0.0
        %1079 = vmatpush1.msra.mxu0 0.0
        %1080 = vmatprep.subr.mxu0 0.0
        %1081 = vmatpush1.msra.mxu0 0.0
        %1082 = vmatprep.subr.mxu0 0.0
        %1083 = vmatpush1.msra.mxu0 0.0
        %1084 = vmatprep.subr.mxu0 0.0
        %1085 = vmatpush1.msra.mxu0 0.0
        %1086 = vmatprep.subr.mxu0 0.0
        %1087 = vmatpush1.msra.mxu0 0.0
        %1088 = vmatprep.subr.mxu0 0.0
        %1089 = vmatpush1.msra.mxu0 0.0
        %1090 = vmatprep.subr.mxu0 0.0
        %1091 = vmatpush1.msra.mxu0 0.0
        %1092 = vmatprep.subr.mxu0 0.0
        %1093 = vmatpush1.msra.mxu0 0.0
        %1094 = vmatprep.subr.mxu0 0.0
        %1095 = vmatpush1.msra.mxu0 0.0
        %1096 = vmatprep.subr.mxu0 0.0
        %1097 = vmatpush1.msra.mxu0 0.0
        %1098 = vmatprep.subr.mxu0 0.0
        %1099 = vmatpush1.msra.mxu0 0.0
        %1100 = vmatprep.subr.mxu0 0.0
        %1101 = vmatpush1.msra.mxu0 0.0
        %1102 = vmatprep.mubr.f32.mxu0 0.0
        %1103 = vmatmul.mubr.f32.gmra.mrb[0].mxu0 %v1026
        %v1104 = vpop.f32.mrb[0].mxu0
        %v1105 = vadd.f32 0.0, %v1104
        %v1106 = vpop.f32.mrb[0].mxu0
        %1107 = vmatprep.mubr.f32.mxu0 0.0
        %1108 = vmatmul.mubr.f32.gmra.mrb[0].mxu0 %v1029
        %v1109 = vpop.f32.mrb[0].mxu0
        %v1110 = vadd.f32 0.0, %v1109
        %v1111 = vpop.f32.mrb[0].mxu0
        %1112 = vmatprep.mubr.f32.mxu0 0.0
        %1113 = vmatmul.mubr.f32.gmra.mrb[0].mxu0 %v1032
        %v1114 = vpop.f32.mrb[0].mxu0
        %v1115 = vadd.f32 0.0, %v1114
        %v1116 = vpop.f32.mrb[0].mxu0
        %1117 = vdwg.mxu0
        %v1119 = vsel %vm1024, %v1105, 0
        %v1122 = vsel %vm1024, %v1110, 0
        %v1125 = vsel %vm1024, %v1115, 0
        %v1128 = vsel %vm1034, %v910, 0
        %1130 = vmatprep.subr.mxu0 0.0
        %1131 = vmatpush1.msra.mxu0 %v1128
        %1132 = vmatprep.subr.mxu0 0.0
        %1133 = vmatpush1.msra.mxu0 0.0
        %1134 = vmatprep.subr.mxu0 0.0
        %1135 = vmatpush1.msra.mxu0 0.0
        %1136 = vmatprep.subr.mxu0 0.0
        %1137 = vmatpush1.msra.mxu0 0.0
        %1138 = vmatprep.subr.mxu0 0.0
        %1139 = vmatpush1.msra.mxu0 0.0
        %1140 = vmatprep.subr.mxu0 0.0
        %1141 = vmatpush1.msra.mxu0 0.0
        %1142 = vmatprep.subr.mxu0 0.0
        %1143 = vmatpush1.msra.mxu0 0.0
        %1144 = vmatprep.subr.mxu0 0.0
        %1145 = vmatpush1.msra.mxu0 0.0
        %1146 = vmatprep.subr.mxu0 0.0
        %1147 = vmatpush1.msra.mxu0 0.0
        %1148 = vmatprep.subr.mxu0 0.0
        %1149 = vmatpush1.msra.mxu0 0.0
        %1150 = vmatprep.subr.mxu0 0.0
        %1151 = vmatpush1.msra.mxu0 0.0
        %1152 = vmatprep.subr.mxu0 0.0
        %1153 = vmatpush1.msra.mxu0 0.0
        %1154 = vmatprep.subr.mxu0 0.0
        %1155 = vmatpush1.msra.mxu0 0.0
        %1156 = vmatprep.subr.mxu0 0.0
        %1157 = vmatpush1.msra.mxu0 0.0
        %1158 = vmatprep.subr.mxu0 0.0
        %1159 = vmatpush1.msra.mxu0 0.0
        %1160 = vmatprep.subr.mxu0 0.0
        %1161 = vmatpush1.msra.mxu0 0.0
        %1162 = vmatprep.subr.mxu0 0.0
        %1163 = vmatpush1.msra.mxu0 0.0
        %1164 = vmatprep.subr.mxu0 0.0
        %1165 = vmatpush1.msra.mxu0 0.0
        %1166 = vmatprep.subr.mxu0 0.0
        %1167 = vmatpush1.msra.mxu0 0.0
        %1168 = vmatprep.subr.mxu0 0.0
        %1169 = vmatpush1.msra.mxu0 0.0
        %1170 = vmatprep.subr.mxu0 0.0
        %1171 = vmatpush1.msra.mxu0 0.0
        %1172 = vmatprep.subr.mxu0 0.0
        %1173 = vmatpush1.msra.mxu0 0.0
        %1174 = vmatprep.subr.mxu0 0.0
        %1175 = vmatpush1.msra.mxu0 0.0
        %1176 = vmatprep.subr.mxu0 0.0
        %1177 = vmatpush1.msra.mxu0 0.0
        %1178 = vmatprep.subr.mxu0 0.0
        %1179 = vmatpush1.msra.mxu0 0.0
        %1180 = vmatprep.subr.mxu0 0.0
        %1181 = vmatpush1.msra.mxu0 0.0
        %1182 = vmatprep.subr.mxu0 0.0
        %1183 = vmatpush1.msra.mxu0 0.0
        %1184 = vmatprep.subr.mxu0 0.0
        %1185 = vmatpush1.msra.mxu0 0.0
        %1186 = vmatprep.subr.mxu0 0.0
        %1187 = vmatpush1.msra.mxu0 0.0
        %1188 = vmatprep.subr.mxu0 0.0
        %1189 = vmatpush1.msra.mxu0 0.0
        %1190 = vmatprep.subr.mxu0 0.0
        %1191 = vmatpush1.msra.mxu0 0.0
        %1192 = vmatprep.subr.mxu0 0.0
        %1193 = vmatpush1.msra.mxu0 0.0
        %1194 = vmatprep.mubr.f32.mxu0 0.0
        %1195 = vmatmul.mubr.f32.gmra.mrb[0].mxu0 %v1119
        %v1196 = vpop.f32.mrb[0].mxu0
        %v1197 = vadd.f32 0.0, %v1196
        %v1198 = vpop.f32.mrb[0].mxu0
        %1199 = vmatprep.mubr.f32.mxu0 0.0
        %1200 = vmatmul.mubr.f32.gmra.mrb[0].mxu0 %v1122
        %v1201 = vpop.f32.mrb[0].mxu0
        %v1202 = vadd.f32 0.0, %v1201
        %v1203 = vpop.f32.mrb[0].mxu0
        %1204 = vmatprep.mubr.f32.mxu0 0.0
        %1205 = vmatmul.mubr.f32.gmra.mrb[0].mxu0 %v1125
        %v1206 = vpop.f32.mrb[0].mxu0
        %v1207 = vadd.f32 0.0, %v1206
        %v1208 = vpop.f32.mrb[0].mxu0
        %1209 = vdwg.mxu0
        %s1210 = scalar_lea.vmem %s541, 24 [#allocation3]
        %1211 = vst.msk [vmem:[%s1210] sm:$0xff] %vm902, %v1197
        %1212 = vst.msk [vmem:[%s1210 + $0x8] sm:$0xff] %vm902, %v1202
        %1213 = vst.msk [vmem:[%s1210 + $0x10] sm:$0xff] %vm902, %v1207
        %v1214 = vld [vmem:[%s559] sm:$0xf]
        %v1215 = vld [vmem:[%s11] sm:$0xff]
        %v1216 = vld [vmem:[%s11 + $0x8] sm:$0xff]
        %v1217 = vld [vmem:[%s11 + $0x10] sm:$0xff]
        %v1218 = vld [vmem:[%s12] sm:$0xf]
        %s1219 = scalar_lea.vmem %s5, 2
        %v1220 = vld [vmem:[%s1219] sm:$0x1]
        %s1221 = scalar_lea.vmem %s6, 2
        %v1222 = vld [vmem:[%s1221] sm:$0x1]
        %1224 = vset.pattern.permute.xlu0 0
        %1225 = vperm.xlu0 %1224, %v1222
        %v1226 = vpop.permute.xlu0 %1225
        %v1228 = vlaneseq
        %v1229 = vshrl.u32 %v1228, 7
        %v1230 = vsub.s32 0, %v1229
        %v1231 = vrot.slane %v1226, %v1230
        %v1233 = vsel %vm583, %v1220, 0
        %v1236 = vsel %vm587, %v1214, 0
        %1238 = vmatprep.subr.mxu0 0.0
        %1239 = vmatpush1.msra.mxu0 %v1236
        %1240 = vmatprep.subr.mxu0 0.0
        %1241 = vmatpush1.msra.mxu0 0.0
        %1242 = vmatprep.subr.mxu0 0.0
        %1243 = vmatpush1.msra.mxu0 0.0
        %1244 = vmatprep.subr.mxu0 0.0
        %1245 = vmatpush1.msra.mxu0 0.0
        %1246 = vmatprep.subr.mxu0 0.0
        %1247 = vmatpush1.msra.mxu0 0.0
        %1248 = vmatprep.subr.mxu0 0.0
        %1249 = vmatpush1.msra.mxu0 0.0
        %1250 = vmatprep.subr.mxu0 0.0
        %1251 = vmatpush1.msra.mxu0 0.0
        %1252 = vmatprep.subr.mxu0 0.0
        %1253 = vmatpush1.msra.mxu0 0.0
        %1254 = vmatprep.subr.mxu0 0.0
        %1255 = vmatpush1.msra.mxu0 0.0
        %1256 = vmatprep.subr.mxu0 0.0
        %1257 = vmatpush1.msra.mxu0 0.0
        %1258 = vmatprep.subr.mxu0 0.0
        %1259 = vmatpush1.msra.mxu0 0.0
        %1260 = vmatprep.subr.mxu0 0.0
        %1261 = vmatpush1.msra.mxu0 0.0
        %1262 = vmatprep.subr.mxu0 0.0
        %1263 = vmatpush1.msra.mxu0 0.0
        %1264 = vmatprep.subr.mxu0 0.0
        %1265 = vmatpush1.msra.mxu0 0.0
        %1266 = vmatprep.subr.mxu0 0.0
        %1267 = vmatpush1.msra.mxu0 0.0
        %1268 = vmatprep.subr.mxu0 0.0
        %1269 = vmatpush1.msra.mxu0 0.0
        %1270 = vmatprep.subr.mxu0 0.0
        %1271 = vmatpush1.msra.mxu0 0.0
        %1272 = vmatprep.subr.mxu0 0.0
        %1273 = vmatpush1.msra.mxu0 0.0
        %1274 = vmatprep.subr.mxu0 0.0
        %1275 = vmatpush1.msra.mxu0 0.0
        %1276 = vmatprep.subr.mxu0 0.0
        %1277 = vmatpush1.msra.mxu0 0.0
        %1278 = vmatprep.subr.mxu0 0.0
        %1279 = vmatpush1.msra.mxu0 0.0
        %1280 = vmatprep.subr.mxu0 0.0
        %1281 = vmatpush1.msra.mxu0 0.0
        %1282 = vmatprep.subr.mxu0 0.0
        %1283 = vmatpush1.msra.mxu0 0.0
        %1284 = vmatprep.subr.mxu0 0.0
        %1285 = vmatpush1.msra.mxu0 0.0
        %1286 = vmatprep.subr.mxu0 0.0
        %1287 = vmatpush1.msra.mxu0 0.0
        %1288 = vmatprep.subr.mxu0 0.0
        %1289 = vmatpush1.msra.mxu0 0.0
        %1290 = vmatprep.subr.mxu0 0.0
        %1291 = vmatpush1.msra.mxu0 0.0
        %1292 = vmatprep.subr.mxu0 0.0
        %1293 = vmatpush1.msra.mxu0 0.0
        %1294 = vmatprep.subr.mxu0 0.0
        %1295 = vmatpush1.msra.mxu0 0.0
        %1296 = vmatprep.subr.mxu0 0.0
        %1297 = vmatpush1.msra.mxu0 0.0
        %1298 = vmatprep.subr.mxu0 0.0
        %1299 = vmatpush1.msra.mxu0 0.0
        %1300 = vmatprep.subr.mxu0 0.0
        %1301 = vmatpush1.msra.mxu0 0.0
        %1302 = vmatprep.mubr.f32.mxu0 0.0
        %1303 = vmatmul.mubr.f32.gmra.mrb[0].mxu0 %v1233
        %v1304 = vpop.f32.mrb[0].mxu0
        %v1305 = vadd.f32 %v1231, %v1304
        %v1306 = vpop.f32.mrb[0].mxu0
        %1307 = vdwg.mxu0
        %vm1308 = vcmask 24576
        %1309 = vst.msk [vmem:[#allocation2] sm:$0x1] %vm1308, %v1305
        %1311 = vrot.lane.b32.xlu0 %v1305, 124
        %v1312 = vpop.permute.xlu0 %1311
        %1314 = vst.msk [vmem:[#allocation2 + $0x1] sm:$0x1] %vm1308, %v1312
        %1315 = vrot.lane.b32.xlu0 %v1305, 120
        %v1316 = vpop.permute.xlu0 %1315
        %1318 = vst.msk [vmem:[#allocation2 + $0x2] sm:$0x1] %vm1308, %v1316
        %1319 = vrot.lane.b32.xlu0 %v1305, 116
        %v1320 = vpop.permute.xlu0 %1319
        %1322 = vst.msk [vmem:[#allocation2 + $0x3] sm:$0x1] %vm1308, %v1320
        %v1323 = vld [vmem:[#allocation2] sm:$0xf]
        %v1325 = vsel %vm583, %v1215, 0
        %v1328 = vsel %vm583, %v1216, 0
        %v1331 = vsel %vm583, %v1217, 0
        %v1334 = vsel %vm587, %v1323, 0
        %1336 = vmatprep.subr.mxu0 0.0
        %1337 = vmatpush1.msra.mxu0 %v1334
        %1338 = vmatprep.subr.mxu0 0.0
        %1339 = vmatpush1.msra.mxu0 0.0
        %1340 = vmatprep.subr.mxu0 0.0
        %1341 = vmatpush1.msra.mxu0 0.0
        %1342 = vmatprep.subr.mxu0 0.0
        %1343 = vmatpush1.msra.mxu0 0.0
        %1344 = vmatprep.subr.mxu0 0.0
        %1345 = vmatpush1.msra.mxu0 0.0
        %1346 = vmatprep.subr.mxu0 0.0
        %1347 = vmatpush1.msra.mxu0 0.0
        %1348 = vmatprep.subr.mxu0 0.0
        %1349 = vmatpush1.msra.mxu0 0.0
        %1350 = vmatprep.subr.mxu0 0.0
        %1351 = vmatpush1.msra.mxu0 0.0
        %1352 = vmatprep.subr.mxu0 0.0
        %1353 = vmatpush1.msra.mxu0 0.0
        %1354 = vmatprep.subr.mxu0 0.0
        %1355 = vmatpush1.msra.mxu0 0.0
        %1356 = vmatprep.subr.mxu0 0.0
        %1357 = vmatpush1.msra.mxu0 0.0
        %1358 = vmatprep.subr.mxu0 0.0
        %1359 = vmatpush1.msra.mxu0 0.0
        %1360 = vmatprep.subr.mxu0 0.0
        %1361 = vmatpush1.msra.mxu0 0.0
        %1362 = vmatprep.subr.mxu0 0.0
        %1363 = vmatpush1.msra.mxu0 0.0
        %1364 = vmatprep.subr.mxu0 0.0
        %1365 = vmatpush1.msra.mxu0 0.0
        %1366 = vmatprep.subr.mxu0 0.0
        %1367 = vmatpush1.msra.mxu0 0.0
        %1368 = vmatprep.subr.mxu0 0.0
        %1369 = vmatpush1.msra.mxu0 0.0
        %1370 = vmatprep.subr.mxu0 0.0
        %1371 = vmatpush1.msra.mxu0 0.0
        %1372 = vmatprep.subr.mxu0 0.0
        %1373 = vmatpush1.msra.mxu0 0.0
        %1374 = vmatprep.subr.mxu0 0.0
        %1375 = vmatpush1.msra.mxu0 0.0
        %1376 = vmatprep.subr.mxu0 0.0
        %1377 = vmatpush1.msra.mxu0 0.0
        %1378 = vmatprep.subr.mxu0 0.0
        %1379 = vmatpush1.msra.mxu0 0.0
        %1380 = vmatprep.subr.mxu0 0.0
        %1381 = vmatpush1.msra.mxu0 0.0
        %1382 = vmatprep.subr.mxu0 0.0
        %1383 = vmatpush1.msra.mxu0 0.0
        %1384 = vmatprep.subr.mxu0 0.0
        %1385 = vmatpush1.msra.mxu0 0.0
        %1386 = vmatprep.subr.mxu0 0.0
        %1387 = vmatpush1.msra.mxu0 0.0
        %1388 = vmatprep.subr.mxu0 0.0
        %1389 = vmatpush1.msra.mxu0 0.0
        %1390 = vmatprep.subr.mxu0 0.0
        %1391 = vmatpush1.msra.mxu0 0.0
        %1392 = vmatprep.subr.mxu0 0.0
        %1393 = vmatpush1.msra.mxu0 0.0
        %1394 = vmatprep.subr.mxu0 0.0
        %1395 = vmatpush1.msra.mxu0 0.0
        %1396 = vmatprep.subr.mxu0 0.0
        %1397 = vmatpush1.msra.mxu0 0.0
        %1398 = vmatprep.subr.mxu0 0.0
        %1399 = vmatpush1.msra.mxu0 0.0
        %1400 = vmatprep.mubr.f32.mxu0 0.0
        %1401 = vmatmul.mubr.f32.gmra.mrb[0].mxu0 %v1325
        %v1402 = vpop.f32.mrb[0].mxu0
        %v1403 = vadd.f32 0.0, %v1402
        %v1404 = vpop.f32.mrb[0].mxu0
        %1405 = vmatprep.mubr.f32.mxu0 0.0
        %1406 = vmatmul.mubr.f32.gmra.mrb[0].mxu0 %v1328
        %v1407 = vpop.f32.mrb[0].mxu0
        %v1408 = vadd.f32 0.0, %v1407
        %v1409 = vpop.f32.mrb[0].mxu0
        %1410 = vmatprep.mubr.f32.mxu0 0.0
        %1411 = vmatmul.mubr.f32.gmra.mrb[0].mxu0 %v1331
        %v1412 = vpop.f32.mrb[0].mxu0
        %v1413 = vadd.f32 0.0, %v1412
        %v1414 = vpop.f32.mrb[0].mxu0
        %1415 = vdwg.mxu0
        %v1417 = vsel %vm583, %v1403, 0
        %v1420 = vsel %vm583, %v1408, 0
        %v1423 = vsel %vm583, %v1413, 0
        %v1426 = vsel %vm587, %v1218, 0
        %1428 = vmatprep.subr.mxu0 0.0
        %1429 = vmatpush1.msra.mxu0 %v1426
        %1430 = vmatprep.subr.mxu0 0.0
        %1431 = vmatpush1.msra.mxu0 0.0
        %1432 = vmatprep.subr.mxu0 0.0
        %1433 = vmatpush1.msra.mxu0 0.0
        %1434 = vmatprep.subr.mxu0 0.0
        %1435 = vmatpush1.msra.mxu0 0.0
        %1436 = vmatprep.subr.mxu0 0.0
        %1437 = vmatpush1.msra.mxu0 0.0
        %1438 = vmatprep.subr.mxu0 0.0
        %1439 = vmatpush1.msra.mxu0 0.0
        %1440 = vmatprep.subr.mxu0 0.0
        %1441 = vmatpush1.msra.mxu0 0.0
        %1442 = vmatprep.subr.mxu0 0.0
        %1443 = vmatpush1.msra.mxu0 0.0
        %1444 = vmatprep.subr.mxu0 0.0
        %1445 = vmatpush1.msra.mxu0 0.0
        %1446 = vmatprep.subr.mxu0 0.0
        %1447 = vmatpush1.msra.mxu0 0.0
        %1448 = vmatprep.subr.mxu0 0.0
        %1449 = vmatpush1.msra.mxu0 0.0
        %1450 = vmatprep.subr.mxu0 0.0
        %1451 = vmatpush1.msra.mxu0 0.0
        %1452 = vmatprep.subr.mxu0 0.0
        %1453 = vmatpush1.msra.mxu0 0.0
        %1454 = vmatprep.subr.mxu0 0.0
        %1455 = vmatpush1.msra.mxu0 0.0
        %1456 = vmatprep.subr.mxu0 0.0
        %1457 = vmatpush1.msra.mxu0 0.0
        %1458 = vmatprep.subr.mxu0 0.0
        %1459 = vmatpush1.msra.mxu0 0.0
        %1460 = vmatprep.subr.mxu0 0.0
        %1461 = vmatpush1.msra.mxu0 0.0
        %1462 = vmatprep.subr.mxu0 0.0
        %1463 = vmatpush1.msra.mxu0 0.0
        %1464 = vmatprep.subr.mxu0 0.0
        %1465 = vmatpush1.msra.mxu0 0.0
        %1466 = vmatprep.subr.mxu0 0.0
        %1467 = vmatpush1.msra.mxu0 0.0
        %1468 = vmatprep.subr.mxu0 0.0
        %1469 = vmatpush1.msra.mxu0 0.0
        %1470 = vmatprep.subr.mxu0 0.0
        %1471 = vmatpush1.msra.mxu0 0.0
        %1472 = vmatprep.subr.mxu0 0.0
        %1473 = vmatpush1.msra.mxu0 0.0
        %1474 = vmatprep.subr.mxu0 0.0
        %1475 = vmatpush1.msra.mxu0 0.0
        %1476 = vmatprep.subr.mxu0 0.0
        %1477 = vmatpush1.msra.mxu0 0.0
        %1478 = vmatprep.subr.mxu0 0.0
        %1479 = vmatpush1.msra.mxu0 0.0
        %1480 = vmatprep.subr.mxu0 0.0
        %1481 = vmatpush1.msra.mxu0 0.0
        %1482 = vmatprep.subr.mxu0 0.0
        %1483 = vmatpush1.msra.mxu0 0.0
        %1484 = vmatprep.subr.mxu0 0.0
        %1485 = vmatpush1.msra.mxu0 0.0
        %1486 = vmatprep.subr.mxu0 0.0
        %1487 = vmatpush1.msra.mxu0 0.0
        %1488 = vmatprep.subr.mxu0 0.0
        %1489 = vmatpush1.msra.mxu0 0.0
        %1490 = vmatprep.subr.mxu0 0.0
        %1491 = vmatpush1.msra.mxu0 0.0
        %1492 = vmatprep.mubr.f32.mxu0 0.0
        %1493 = vmatmul.mubr.f32.gmra.mrb[0].mxu0 %v1417
        %v1494 = vpop.f32.mrb[0].mxu0
        %v1495 = vadd.f32 0.0, %v1494
        %v1496 = vpop.f32.mrb[0].mxu0
        %1497 = vmatprep.mubr.f32.mxu0 0.0
        %1498 = vmatmul.mubr.f32.gmra.mrb[0].mxu0 %v1420
        %v1499 = vpop.f32.mrb[0].mxu0
        %v1500 = vadd.f32 0.0, %v1499
        %v1501 = vpop.f32.mrb[0].mxu0
        %1502 = vmatprep.mubr.f32.mxu0 0.0
        %1503 = vmatmul.mubr.f32.gmra.mrb[0].mxu0 %v1423
        %v1504 = vpop.f32.mrb[0].mxu0
        %v1505 = vadd.f32 0.0, %v1504
        %v1506 = vpop.f32.mrb[0].mxu0
        %1507 = vdwg.mxu0
        %s1508 = scalar_lea.vmem %s541, 48 [#allocation3]
        %1509 = vst.msk [vmem:[%s1508] sm:$0xff] %vm902, %v1495
        %1510 = vst.msk [vmem:[%s1508 + $0x8] sm:$0xff] %vm902, %v1500
        %1511 = vst.msk [vmem:[%s1508 + $0x10] sm:$0xff] %vm902, %v1505
        %v1512 = vld [vmem:[%s563] sm:$0xf]
        %v1513 = vld [vmem:[%s13] sm:$0xff]
        %v1514 = vld [vmem:[%s13 + $0x8] sm:$0xff]
        %v1515 = vld [vmem:[%s13 + $0x10] sm:$0xff]
        %v1516 = vld [vmem:[%s14] sm:$0x3]
        %s1517 = scalar_lea.vmem %s5, 3
        %v1518 = vld [vmem:[%s1517] sm:$0x1]
        %s1519 = scalar_lea.vmem %s6, 3
        %v1520 = vld [vmem:[%s1519] sm:$0x1]
        %1522 = vset.pattern.permute.xlu0 0
        %1523 = vperm.xlu0 %1522, %v1520
        %v1524 = vpop.permute.xlu0 %1523
        %v1526 = vlaneseq
        %v1527 = vshrl.u32 %v1526, 7
        %v1528 = vsub.s32 0, %v1527
        %v1529 = vrot.slane %v1524, %v1528
        %v1531 = vsel %vm583, %v1518, 0
        %v1534 = vsel %vm587, %v1512, 0
        %1536 = vmatprep.subr.mxu0 0.0
        %1537 = vmatpush1.msra.mxu0 %v1534
        %1538 = vmatprep.subr.mxu0 0.0
        %1539 = vmatpush1.msra.mxu0 0.0
        %1540 = vmatprep.subr.mxu0 0.0
        %1541 = vmatpush1.msra.mxu0 0.0
        %1542 = vmatprep.subr.mxu0 0.0
        %1543 = vmatpush1.msra.mxu0 0.0
        %1544 = vmatprep.subr.mxu0 0.0
        %1545 = vmatpush1.msra.mxu0 0.0
        %1546 = vmatprep.subr.mxu0 0.0
        %1547 = vmatpush1.msra.mxu0 0.0
        %1548 = vmatprep.subr.mxu0 0.0
        %1549 = vmatpush1.msra.mxu0 0.0
        %1550 = vmatprep.subr.mxu0 0.0
        %1551 = vmatpush1.msra.mxu0 0.0
        %1552 = vmatprep.subr.mxu0 0.0
        %1553 = vmatpush1.msra.mxu0 0.0
        %1554 = vmatprep.subr.mxu0 0.0
        %1555 = vmatpush1.msra.mxu0 0.0
        %1556 = vmatprep.subr.mxu0 0.0
        %1557 = vmatpush1.msra.mxu0 0.0
        %1558 = vmatprep.subr.mxu0 0.0
        %1559 = vmatpush1.msra.mxu0 0.0
        %1560 = vmatprep.subr.mxu0 0.0
        %1561 = vmatpush1.msra.mxu0 0.0
        %1562 = vmatprep.subr.mxu0 0.0
        %1563 = vmatpush1.msra.mxu0 0.0
        %1564 = vmatprep.subr.mxu0 0.0
        %1565 = vmatpush1.msra.mxu0 0.0
        %1566 = vmatprep.subr.mxu0 0.0
        %1567 = vmatpush1.msra.mxu0 0.0
        %1568 = vmatprep.subr.mxu0 0.0
        %1569 = vmatpush1.msra.mxu0 0.0
        %1570 = vmatprep.subr.mxu0 0.0
        %1571 = vmatpush1.msra.mxu0 0.0
        %1572 = vmatprep.subr.mxu0 0.0
        %1573 = vmatpush1.msra.mxu0 0.0
        %1574 = vmatprep.subr.mxu0 0.0
        %1575 = vmatpush1.msra.mxu0 0.0
        %1576 = vmatprep.subr.mxu0 0.0
        %1577 = vmatpush1.msra.mxu0 0.0
        %1578 = vmatprep.subr.mxu0 0.0
        %1579 = vmatpush1.msra.mxu0 0.0
        %1580 = vmatprep.subr.mxu0 0.0
        %1581 = vmatpush1.msra.mxu0 0.0
        %1582 = vmatprep.subr.mxu0 0.0
        %1583 = vmatpush1.msra.mxu0 0.0
        %1584 = vmatprep.subr.mxu0 0.0
        %1585 = vmatpush1.msra.mxu0 0.0
        %1586 = vmatprep.subr.mxu0 0.0
        %1587 = vmatpush1.msra.mxu0 0.0
        %1588 = vmatprep.subr.mxu0 0.0
        %1589 = vmatpush1.msra.mxu0 0.0
        %1590 = vmatprep.subr.mxu0 0.0
        %1591 = vmatpush1.msra.mxu0 0.0
        %1592 = vmatprep.subr.mxu0 0.0
        %1593 = vmatpush1.msra.mxu0 0.0
        %1594 = vmatprep.subr.mxu0 0.0
        %1595 = vmatpush1.msra.mxu0 0.0
        %1596 = vmatprep.subr.mxu0 0.0
        %1597 = vmatpush1.msra.mxu0 0.0
        %1598 = vmatprep.subr.mxu0 0.0
        %1599 = vmatpush1.msra.mxu0 0.0
        %1600 = vmatprep.mubr.f32.mxu0 0.0
        %1601 = vmatmul.mubr.f32.gmra.mrb[0].mxu0 %v1531
        %v1602 = vpop.f32.mrb[0].mxu0
        %v1603 = vadd.f32 %v1529, %v1602
        %v1604 = vpop.f32.mrb[0].mxu0
        %1605 = vdwg.mxu0
        %vm1606 = vcmask 8192
        %1607 = vst.msk [vmem:[#allocation2] sm:$0x1] %vm1606, %v1603
        %1609 = vrot.lane.b32.xlu0 %v1603, 126
        %v1610 = vpop.permute.xlu0 %1609
        %1612 = vst.msk [vmem:[#allocation2 + $0x1] sm:$0x1] %vm1606, %v1610
        %v1613 = vld [vmem:[#allocation2] sm:$0x3]
        %vm1614 = vcmask 15360
        %v1616 = vsel %vm1614, %v1513, 0
        %v1619 = vsel %vm1614, %v1514, 0
        %v1622 = vsel %vm1614, %v1515, 0
        %vm1624 = vcmask 1041408
        %v1626 = vsel %vm1624, %v1613, 0
        %1628 = vmatprep.subr.mxu0 0.0
        %1629 = vmatpush1.msra.mxu0 %v1626
        %1630 = vmatprep.subr.mxu0 0.0
        %1631 = vmatpush1.msra.mxu0 0.0
        %1632 = vmatprep.subr.mxu0 0.0
        %1633 = vmatpush1.msra.mxu0 0.0
        %1634 = vmatprep.subr.mxu0 0.0
        %1635 = vmatpush1.msra.mxu0 0.0
        %1636 = vmatprep.subr.mxu0 0.0
        %1637 = vmatpush1.msra.mxu0 0.0
        %1638 = vmatprep.subr.mxu0 0.0
        %1639 = vmatpush1.msra.mxu0 0.0
        %1640 = vmatprep.subr.mxu0 0.0
        %1641 = vmatpush1.msra.mxu0 0.0
        %1642 = vmatprep.subr.mxu0 0.0
        %1643 = vmatpush1.msra.mxu0 0.0
        %1644 = vmatprep.subr.mxu0 0.0
        %1645 = vmatpush1.msra.mxu0 0.0
        %1646 = vmatprep.subr.mxu0 0.0
        %1647 = vmatpush1.msra.mxu0 0.0
        %1648 = vmatprep.subr.mxu0 0.0
        %1649 = vmatpush1.msra.mxu0 0.0
        %1650 = vmatprep.subr.mxu0 0.0
        %1651 = vmatpush1.msra.mxu0 0.0
        %1652 = vmatprep.subr.mxu0 0.0
        %1653 = vmatpush1.msra.mxu0 0.0
        %1654 = vmatprep.subr.mxu0 0.0
        %1655 = vmatpush1.msra.mxu0 0.0
        %1656 = vmatprep.subr.mxu0 0.0
        %1657 = vmatpush1.msra.mxu0 0.0
        %1658 = vmatprep.subr.mxu0 0.0
        %1659 = vmatpush1.msra.mxu0 0.0
        %1660 = vmatprep.subr.mxu0 0.0
        %1661 = vmatpush1.msra.mxu0 0.0
        %1662 = vmatprep.subr.mxu0 0.0
        %1663 = vmatpush1.msra.mxu0 0.0
        %1664 = vmatprep.subr.mxu0 0.0
        %1665 = vmatpush1.msra.mxu0 0.0
        %1666 = vmatprep.subr.mxu0 0.0
        %1667 = vmatpush1.msra.mxu0 0.0
        %1668 = vmatprep.subr.mxu0 0.0
        %1669 = vmatpush1.msra.mxu0 0.0
        %1670 = vmatprep.subr.mxu0 0.0
        %1671 = vmatpush1.msra.mxu0 0.0
        %1672 = vmatprep.subr.mxu0 0.0
        %1673 = vmatpush1.msra.mxu0 0.0
        %1674 = vmatprep.subr.mxu0 0.0
        %1675 = vmatpush1.msra.mxu0 0.0
        %1676 = vmatprep.subr.mxu0 0.0
        %1677 = vmatpush1.msra.mxu0 0.0
        %1678 = vmatprep.subr.mxu0 0.0
        %1679 = vmatpush1.msra.mxu0 0.0
        %1680 = vmatprep.subr.mxu0 0.0
        %1681 = vmatpush1.msra.mxu0 0.0
        %1682 = vmatprep.subr.mxu0 0.0
        %1683 = vmatpush1.msra.mxu0 0.0
        %1684 = vmatprep.subr.mxu0 0.0
        %1685 = vmatpush1.msra.mxu0 0.0
        %1686 = vmatprep.subr.mxu0 0.0
        %1687 = vmatpush1.msra.mxu0 0.0
        %1688 = vmatprep.subr.mxu0 0.0
        %1689 = vmatpush1.msra.mxu0 0.0
        %1690 = vmatprep.subr.mxu0 0.0
        %1691 = vmatpush1.msra.mxu0 0.0
        %1692 = vmatprep.mubr.f32.mxu0 0.0
        %1693 = vmatmul.mubr.f32.gmra.mrb[0].mxu0 %v1616
        %v1694 = vpop.f32.mrb[0].mxu0
        %v1695 = vadd.f32 0.0, %v1694
        %v1696 = vpop.f32.mrb[0].mxu0
        %1697 = vmatprep.mubr.f32.mxu0 0.0
        %1698 = vmatmul.mubr.f32.gmra.mrb[0].mxu0 %v1619
        %v1699 = vpop.f32.mrb[0].mxu0
        %v1700 = vadd.f32 0.0, %v1699
        %v1701 = vpop.f32.mrb[0].mxu0
        %1702 = vmatprep.mubr.f32.mxu0 0.0
        %1703 = vmatmul.mubr.f32.gmra.mrb[0].mxu0 %v1622
        %v1704 = vpop.f32.mrb[0].mxu0
        %v1705 = vadd.f32 0.0, %v1704
        %v1706 = vpop.f32.mrb[0].mxu0
        %1707 = vdwg.mxu0
        %v1709 = vsel %vm1614, %v1695, 0
        %v1712 = vsel %vm1614, %v1700, 0
        %v1715 = vsel %vm1614, %v1705, 0
        %v1718 = vsel %vm1624, %v1516, 0
        %1720 = vmatprep.subr.mxu0 0.0
        %1721 = vmatpush1.msra.mxu0 %v1718
        %1722 = vmatprep.subr.mxu0 0.0
        %1723 = vmatpush1.msra.mxu0 0.0
        %1724 = vmatprep.subr.mxu0 0.0
        %1725 = vmatpush1.msra.mxu0 0.0
        %1726 = vmatprep.subr.mxu0 0.0
        %1727 = vmatpush1.msra.mxu0 0.0
        %1728 = vmatprep.subr.mxu0 0.0
        %1729 = vmatpush1.msra.mxu0 0.0
        %1730 = vmatprep.subr.mxu0 0.0
        %1731 = vmatpush1.msra.mxu0 0.0
        %1732 = vmatprep.subr.mxu0 0.0
        %1733 = vmatpush1.msra.mxu0 0.0
        %1734 = vmatprep.subr.mxu0 0.0
        %1735 = vmatpush1.msra.mxu0 0.0
        %1736 = vmatprep.subr.mxu0 0.0
        %1737 = vmatpush1.msra.mxu0 0.0
        %1738 = vmatprep.subr.mxu0 0.0
        %1739 = vmatpush1.msra.mxu0 0.0
        %1740 = vmatprep.subr.mxu0 0.0
        %1741 = vmatpush1.msra.mxu0 0.0
        %1742 = vmatprep.subr.mxu0 0.0
        %1743 = vmatpush1.msra.mxu0 0.0
        %1744 = vmatprep.subr.mxu0 0.0
        %1745 = vmatpush1.msra.mxu0 0.0
        %1746 = vmatprep.subr.mxu0 0.0
        %1747 = vmatpush1.msra.mxu0 0.0
        %1748 = vmatprep.subr.mxu0 0.0
        %1749 = vmatpush1.msra.mxu0 0.0
        %1750 = vmatprep.subr.mxu0 0.0
        %1751 = vmatpush1.msra.mxu0 0.0
        %1752 = vmatprep.subr.mxu0 0.0
        %1753 = vmatpush1.msra.mxu0 0.0
        %1754 = vmatprep.subr.mxu0 0.0
        %1755 = vmatpush1.msra.mxu0 0.0
        %1756 = vmatprep.subr.mxu0 0.0
        %1757 = vmatpush1.msra.mxu0 0.0
        %1758 = vmatprep.subr.mxu0 0.0
        %1759 = vmatpush1.msra.mxu0 0.0
        %1760 = vmatprep.subr.mxu0 0.0
        %1761 = vmatpush1.msra.mxu0 0.0
        %1762 = vmatprep.subr.mxu0 0.0
        %1763 = vmatpush1.msra.mxu0 0.0
        %1764 = vmatprep.subr.mxu0 0.0
        %1765 = vmatpush1.msra.mxu0 0.0
        %1766 = vmatprep.subr.mxu0 0.0
        %1767 = vmatpush1.msra.mxu0 0.0
        %1768 = vmatprep.subr.mxu0 0.0
        %1769 = vmatpush1.msra.mxu0 0.0
        %1770 = vmatprep.subr.mxu0 0.0
        %1771 = vmatpush1.msra.mxu0 0.0
        %1772 = vmatprep.subr.mxu0 0.0
        %1773 = vmatpush1.msra.mxu0 0.0
        %1774 = vmatprep.subr.mxu0 0.0
        %1775 = vmatpush1.msra.mxu0 0.0
        %1776 = vmatprep.subr.mxu0 0.0
        %1777 = vmatpush1.msra.mxu0 0.0
        %1778 = vmatprep.subr.mxu0 0.0
        %1779 = vmatpush1.msra.mxu0 0.0
        %1780 = vmatprep.subr.mxu0 0.0
        %1781 = vmatpush1.msra.mxu0 0.0
        %1782 = vmatprep.subr.mxu0 0.0
        %1783 = vmatpush1.msra.mxu0 0.0
        %1784 = vmatprep.mubr.f32.mxu0 0.0
        %1785 = vmatmul.mubr.f32.gmra.mrb[0].mxu0 %v1709
        %v1786 = vpop.f32.mrb[0].mxu0
        %v1787 = vadd.f32 0.0, %v1786
        %v1788 = vpop.f32.mrb[0].mxu0
        %1789 = vmatprep.mubr.f32.mxu0 0.0
        %1790 = vmatmul.mubr.f32.gmra.mrb[0].mxu0 %v1712
        %v1791 = vpop.f32.mrb[0].mxu0
        %v1792 = vadd.f32 0.0, %v1791
        %v1793 = vpop.f32.mrb[0].mxu0
        %1794 = vmatprep.mubr.f32.mxu0 0.0
        %1795 = vmatmul.mubr.f32.gmra.mrb[0].mxu0 %v1715
        %v1796 = vpop.f32.mrb[0].mxu0
        %v1797 = vadd.f32 0.0, %v1796
        %v1798 = vpop.f32.mrb[0].mxu0
        %1799 = vdwg.mxu0
        %s1800 = scalar_lea.vmem %s541, 72 [#allocation3]
        %1801 = vst.msk [vmem:[%s1800] sm:$0xff] %vm902, %v1787
        %1802 = vst.msk [vmem:[%s1800 + $0x8] sm:$0xff] %vm902, %v1792
        %1803 = vst.msk [vmem:[%s1800 + $0x10] sm:$0xff] %vm902, %v1797
        %v1804 = vld [vmem:[%s546] sm:$0xff]
        %v1805 = vld [vmem:[%s546 + $0x8] sm:$0xff]
        %v1806 = vld [vmem:[%s546 + $0x10] sm:$0xff]
        %v1807 = vld [vmem:[%s546 + $0x18] sm:$0xff]
        %v1808 = vld [vmem:[%s546 + $0x20] sm:$0xff]
        %v1809 = vld [vmem:[%s546 + $0x28] sm:$0xff]
        %v1810 = vld [vmem:[%s546 + $0x30] sm:$0xff]
        %v1811 = vld [vmem:[%s546 + $0x38] sm:$0xff]
        %v1812 = vld [vmem:[%s546 + $0x40] sm:$0xff]
        %v1813 = vld [vmem:[%s546 + $0x48] sm:$0xff]
        %v1814 = vld [vmem:[%s546 + $0x50] sm:$0xff]
        %v1815 = vld [vmem:[%s546 + $0x58] sm:$0xff]
        %s1816 = scalar_lea.vmem %s541, 96 [#allocation3]
        %1817 = vst.msk [vmem:[%s1816] sm:$0xff] %vm902, %v1804
        %1818 = vst.msk [vmem:[%s1816 + $0x8] sm:$0xff] %vm902, %v1805
        %1819 = vst.msk [vmem:[%s1816 + $0x10] sm:$0xff] %vm902, %v1806
        %1820 = vst.msk [vmem:[%s1816 + $0x18] sm:$0xff] %vm902, %v1807
        %1821 = vst.msk [vmem:[%s1816 + $0x20] sm:$0xff] %vm902, %v1808
        %1822 = vst.msk [vmem:[%s1816 + $0x28] sm:$0xff] %vm902, %v1809
        %1823 = vst.msk [vmem:[%s1816 + $0x30] sm:$0xff] %vm902, %v1810
        %1824 = vst.msk [vmem:[%s1816 + $0x38] sm:$0xff] %vm902, %v1811
        %1825 = vst.msk [vmem:[%s1816 + $0x40] sm:$0xff] %vm902, %v1812
        %1826 = vst.msk [vmem:[%s1816 + $0x48] sm:$0xff] %vm902, %v1813
        %1827 = vst.msk [vmem:[%s1816 + $0x50] sm:$0xff] %vm902, %v1814
        %1828 = vst.msk [vmem:[%s1816 + $0x58] sm:$0xff] %vm902, %v1815
        %s1829 = sand.u32 %s377, 1
        %s1830 = scalar_lea.sflag [#allocation4], %s1829
        %s1831 = sand.u32 %s377, 1
        %s1832 = smul.addr %s1831, 192
        %s1833 = scalar_lea.vmem [#allocation3], %s1832
        // Predicated region
        $region81: #{spp_block.1} parent=79 // pred_check
          %p1834 = pneg %p387
        $region82: #{spp_block.1} parent=79 // pred_check_branch
          %1836 = sbr.rel (%p1834) target = $region84
        $region83: #{spp_block.1} parent=79 // pred_region
          %s1838 = ssub.s32 3072, 3072
          %1839 = vsyncadd %s1830, %s1838
          %s1840 = smul.addr %s29, 24
          %s1841 = smul.addr %s1840, 128
          %s1842 = scalar_lea.hbm %s15, %s1841
          %s1843 = sshll.u32 %s1833, 4
          %s1844 = int_to_ptr.vmem [resolvable:$true] %s1843
          %1849 = dma.vmem_to_hbm [thread:$0]  %s1844, 3072, %s1842, %s1830, 128, 128, 8
        $region84: #{spp_block.1} parent=79 // pred_fallthru
          _
      $region80: #{spp_block.1} parent=5 // pred_fallthru
        _
      %p1850 = scmp.le.s32.totalorder 2, %s24
      // Predicated region
      $region85: #{spp_block.1} parent=5 // pred_check
        %p1851 = pneg %p1850
      $region86: #{spp_block.1} parent=5 // pred_check_branch
        %1853 = sbr.rel (%p1851) target = $region88
      $region87: #{spp_block.1} parent=5 // pred_region
        %s1854 = ssub.s32 %s24, 2
        // Predicated region
        $region89: #{spp_block.1} parent=87 // pred_check
          %p1855 = pneg %p393
        $region90: #{spp_block.1} parent=87 // pred_check_branch
          %1857 = sbr.rel (%p1855) target = $region92
        $region91: #{spp_block.1} parent=87 // pred_region
          %s1858 = sand.u32 %s378, 1
          %s1859 = scalar_lea.sflag [#allocation4], %s1858
          %s1860 = sand.u32 %s378, 1
          %s1861 = smul.addr %s1860, 192
          %s1862 = scalar_lea.vmem [#allocation3], %s1861
          %1863 = dma.done %s1859, 3072
        $region92: #{spp_block.1} parent=87 // pred_fallthru
          _
      $region88: #{spp_block.1} parent=5 // pred_fallthru
        _
    $region6: #{spp_block.1} parent=1 // loop_footer
      %s28 = sadd.s32 1, %s24
    $region7: #{spp_block.1} parent=1 // loop_footer_branch
      %23 = sbr.rel target = $region3
    $region8: #{spp_block.1} parent=1 // loop_exit
      _
    %1864 = vsyncpa [#allocation4], 1
    %s1865 = scalar_lea.sflag [#allocation4], 1
    %1866 = vsyncpa %s1865, 1

</llo_original>
